<compile_context>
chip_gen: v7x
topology: tpu7x:2x2x1
jax: 0.10.0
libtpu: 0.0.40
codegen_flags: <defaults>
</compile_context>

<pallas_src>
import functools

import jax
import jax.numpy as jnp
from jax.experimental import pallas as pl
from jax.experimental.pallas import tpu as pltpu

EPS = 1e-5          # nn.BatchNorm2d default
NEG_SLOPE = 0.01    # nn.LeakyReLU default negative_slope
LANE = 128
SUBLANE = 8
MAX_TILE_M = 512    # rows of the im2col matrix per grid step (sweep 512-1024)
STATS_ROWS = 8      # row 0 = sum, row 1 = sum(y^2); rows 2..7 zero (tile-aligned)
VMEM_BUDGET = 12 << 20   # per-step double-buffered working-set cap (v7x-safe)
VMEM_LIMIT = 32 * 1024 * 1024


def _leaky_relu(x):
    return jnp.where(x > 0, x, NEG_SLOPE * x)


def _round_up(x, m):
    return (x + m - 1) // m * m


# ---------------------------------------------------------------------------
# Pallas kernels
# ---------------------------------------------------------------------------
def _conv_stats_kernel(cols_ref, w_ref, y_ref, stats_ref):
    """Pass 1: y_tile = cols_tile @ W (bf16 in, f32 acc, bf16 out) plus
    accumulation of per-channel [sum, sum(y^2)] directly into the VMEM-resident
    stats output block (constant block index along the inner 'arbitrary' axis)."""
    j = pl.program_id(1)

    y = jnp.dot(cols_ref[...], w_ref[...], preferred_element_type=jnp.float32)
    y_ref[...] = y.astype(y_ref.dtype)

    cp = y.shape[-1]
    upd = jnp.concatenate(
        [jnp.sum(y, axis=0, keepdims=True),
         jnp.sum(y * y, axis=0, keepdims=True),
         jnp.zeros((STATS_ROWS - 2, cp), jnp.float32)],
        axis=0)

    @pl.when(j == 0)
    def _():
        stats_ref[...] = jnp.zeros_like(stats_ref)

    stats_ref[...] += upd


def _bn_act_kernel(y_ref, s_ref, t_ref, o_ref, *, act):
    """Pass 2: o = [LeakyReLU]( y * s + t ) with pre-folded BN scale/shift."""
    y = y_ref[...].astype(jnp.float32) * s_ref[...] + t_ref[...]
    if act:
        y = _leaky_relu(y)
    o_ref[...] = y.astype(o_ref.dtype)


def _bn_act_add_act_kernel(y_ref, s_ref, t_ref, sc_ref, o_ref):
    """Pass 2 (fused tail): o = LeakyReLU( LeakyReLU(y*s + t) + shortcut )."""
    y = _leaky_relu(y_ref[...].astype(jnp.float32) * s_ref[...] + t_ref[...])
    o_ref[...] = _leaky_relu(y + sc_ref[...].astype(jnp.float32)).astype(o_ref.dtype)


# ---------------------------------------------------------------------------
# Pallas-call wrappers
# ---------------------------------------------------------------------------
def _pick_tiling(m, kp, cp):
    """Pick tile_m (multiple of 16) under a per-step VMEM budget, and split M
    into two core-parallel chunks when it divides evenly (doubles pass-1
    throughput on v7x's two TensorCores; harmless sequential outer loop on
    v5e/v6e)."""
    tile = min(MAX_TILE_M, _round_up(m, 16))

    def step_bytes(t):
        return (2 * t * kp * 2 +            # cols tile, bf16, double-buffered
                2 * kp * cp * 2 +           # W tile, bf16, double-buffered
                2 * t * cp * 2 +            # y out tile, bf16, double-buffered
                2 * STATS_ROWS * cp * 4)    # stats block, f32

    while tile > 16 and step_bytes(tile) > VMEM_BUDGET:
        tile = _round_up(tile // 2, 16)

    tiles = _round_up(m, tile) // tile
    splits = 2 if (tiles >= 2 and tiles % 2 == 0) else 1
    mp = _round_up(m, splits * tile)
    return tile, splits, mp


def _conv_matmul_stats(cols, w, tile_m, splits, mp):
    """Tiled (M, K) @ (K, Cout) with per-channel sum/sumsq. Returns padded
    (Mp, Cp) bf16 raw conv output and (splits*STATS_ROWS, Cp) f32 stats."""
    m, k = cols.shape
    cout = w.shape[1]
    kp = _round_up(k, 16)               # bf16 packs two rows per sublane
    cp = _round_up(cout, LANE)

    cols_p = jnp.pad(cols.astype(jnp.bfloat16), ((0, mp - m), (0, kp - k)))
    w_p = jnp.pad(w.astype(jnp.bfloat16), ((0, kp - k), (0, cp - cout)))

    inner = mp // (splits * tile_m)
    flops = 2 * mp * kp * cp
    bytes_accessed = (cols_p.size * 2 + w_p.size * 2 + mp * cp * 2
                      + splits * STATS_ROWS * cp * 4)

    y_raw, stats = pl.pallas_call(
        _conv_stats_kernel,
        out_shape=(jax.ShapeDtypeStruct((mp, cp), jnp.bfloat16),
                   jax.ShapeDtypeStruct((splits * STATS_ROWS, cp), jnp.float32)),
        grid_spec=pltpu.PrefetchScalarGridSpec(
            num_scalar_prefetch=0,
            grid=(splits, inner),
            in_specs=[pl.BlockSpec((tile_m, kp), lambda i, j: (i * inner + j, 0)),
                      pl.BlockSpec((kp, cp), lambda i, j: (0, 0))],
            out_specs=(pl.BlockSpec((tile_m, cp), lambda i, j: (i * inner + j, 0)),
                       pl.BlockSpec((STATS_ROWS, cp), lambda i, j: (i, 0)))),
        compiler_params=pltpu.CompilerParams(
            dimension_semantics=("parallel", "arbitrary"),
            vmem_limit_bytes=VMEM_LIMIT),
        cost_estimate=pl.CostEstimate(flops=flops, transcendentals=0,
                                      bytes_accessed=bytes_accessed),
    )(cols_p, w_p)
    return y_raw, stats


def _fold_bn(stats, gamma, beta, m_valid):
    """Fold training-mode BN into one per-channel scale/shift (tiny JAX op)."""
    cp = stats.shape[-1]
    st = stats.reshape(-1, STATS_ROWS, cp).sum(axis=0)   # combine core partials
    inv_m = 1.0 / float(m_valid)
    mean = st[0] * inv_m
    var = jnp.maximum(st[1] * inv_m - mean * mean, 0.0)
    g = jnp.zeros((cp,), jnp.float32).at[: gamma.shape[0]].set(gamma.astype(jnp.float32))
    b = jnp.zeros((cp,), jnp.float32).at[: beta.shape[0]].set(beta.astype(jnp.float32))
    s = g * jax.lax.rsqrt(var + EPS)
    t = b - mean * s
    return s.reshape(1, cp), t.reshape(1, cp)


def _bn_apply(y_raw, scale, shift, tile_m, *, act, shortcut=None,
              out_dtype=jnp.bfloat16):
    """Pass 2: tiled FMA + activation (+ residual add + activation)."""
    mp, cp = y_raw.shape
    grid = (mp // tile_m,)
    tile = pl.BlockSpec((tile_m, cp), lambda i: (i, 0))
    small = pl.BlockSpec((1, cp), lambda i: (0, 0))

    if shortcut is None:
        kernel = functools.partial(_bn_act_kernel, act=act)
        in_specs = [tile, small, small]
        args = (y_raw, scale, shift)
    else:
        kernel = _bn_act_add_act_kernel
        in_specs = [tile, small, small, tile]
        args = (y_raw, scale, shift, shortcut)

    return pl.pallas_call(
        kernel,
        out_shape=jax.ShapeDtypeStruct((mp, cp), out_dtype),
        grid_spec=pltpu.PrefetchScalarGridSpec(
            num_scalar_prefetch=0,
            grid=grid,
            in_specs=in_specs,
            out_specs=tile),
        compiler_params=pltpu.CompilerParams(
            dimension_semantics=("parallel",),      # shards across TCs on v7x
            vmem_limit_bytes=VMEM_LIMIT),
    )(*args)


# ---------------------------------------------------------------------------
# JAX glue: im2col + parameter setup
# ---------------------------------------------------------------------------
def _im2col(x_nhwc, ksize, stride, padding):
    """(N,H,W,C) -> (N*Ho*Wo, ksize*ksize*C), patch order (ky, kx, c)."""
    n, h, w, c = x_nhwc.shape
    xp = jnp.pad(x_nhwc, ((0, 0), (padding, padding), (padding, padding), (0, 0)))
    ho = (h + 2 * padding - ksize) // stride + 1
    wo = (w + 2 * padding - ksize) // stride + 1
    patches = []
    for ky in range(ksize):
        for kx in range(ksize):
            sl = xp[:, ky:ky + stride * (ho - 1) + 1:stride,
                      kx:kx + stride * (wo - 1) + 1:stride, :]
            patches.append(sl)
    cols = jnp.concatenate(patches, axis=-1)             # (N, Ho, Wo, k*k*C)
    return cols.reshape(n * ho * wo, ksize * ksize * c), (n, ho, wo)


def init_params(key, in_channels, out_channels, downsample):
    """Deterministic synthetic parameters with the shapes nn.Module.__init__ implies.

    Conv weights are stored pre-reshaped for the im2col matmul:
      torch (Cout, Cin, KH, KW) -> (KH, KW, Cin, Cout) -> (KH*KW*Cin, Cout)
    Conv biases are omitted: a bias immediately before training-mode BatchNorm
    is exactly cancelled by the mean subtraction, so the forward is unchanged.
    BN gamma=1, beta=0 (PyTorch init)."""
    keys = jax.random.split(key, 3)

    def conv_w(k, cin, cout, ks):
        fan_in = ks * ks * cin
        w = jax.random.normal(k, (ks, ks, cin, cout), jnp.float32) / jnp.sqrt(
            jnp.float32(fan_in))
        return w.reshape(ks * ks * cin, cout)

    p = {
        "w1": conv_w(keys[0], in_channels, out_channels, 3),
        "g1": jnp.ones((out_channels,), jnp.float32),
        "beta1": jnp.zeros((out_channels,), jnp.float32),
        "w2": conv_w(keys[1], out_channels, out_channels, 3),
        "g2": jnp.ones((out_channels,), jnp.float32),
        "beta2": jnp.zeros((out_channels,), jnp.float32),
    }
    if downsample:
        p["ws"] = conv_w(keys[2], in_channels, out_channels, 1)
        p["gs"] = jnp.ones((out_channels,), jnp.float32)
        p["betas"] = jnp.zeros((out_channels,), jnp.float32)
    return p


# ---------------------------------------------------------------------------
# ResBlock forward
# ---------------------------------------------------------------------------
def res_block_forward(x_nchw, params, downsample):
    x = jnp.transpose(x_nchw, (0, 2, 3, 1))                 # NCHW -> NHWC
    xb = x.astype(jnp.bfloat16)                              # single cast pass
    n, h, w, cin = x.shape
    cout = params["w1"].shape[-1]
    stride1 = 2 if downsample else 1

    # One consistent tiling for all three convs of the block.
    cols1, (n_, ho, wo) = _im2col(xb, 3, stride1, 1)
    m = n_ * ho * wo
    cp = _round_up(cout, LANE)
    kp_max = _round_up(9 * max(cin, cout), 16)
    tile_m, splits, mp = _pick_tiling(m, kp_max, cp)

    # conv1 (3x3, stride 1 or 2, pad 1) -> bn1 -> LeakyReLU
    y1, st1 = _conv_matmul_stats(cols1, params["w1"], tile_m, splits, mp)
    s1, t1 = _fold_bn(st1, params["g1"], params["beta1"], m)
    a1 = _bn_apply(y1, s1, t1, tile_m, act=True)             # bf16 (Mp, Cp)
    a1_nhwc = a1[:m, :cout].reshape(n_, ho, wo, cout)

    # shortcut branch, kept at padded bf16 (Mp, Cp) so it fuses into the tail
    if downsample:
        xs = xb[:, ::2, ::2, :].reshape(m, cin)              # 1x1 conv, stride 2
        ys, sts = _conv_matmul_stats(xs, params["ws"], tile_m, splits, mp)
        ss, ts = _fold_bn(sts, params["gs"], params["betas"], m)
        sc = _bn_apply(ys, ss, ts, tile_m, act=False)
    else:
        assert cin == cout, "identity shortcut requires in_channels == out_channels"
        sc = jnp.pad(xb.reshape(m, cin), ((0, mp - m), (0, cp - cin)))

    # conv2 (3x3, stride 1, pad 1) -> bn2 -> LeakyReLU, fused +shortcut, LeakyReLU
    cols2, _ = _im2col(a1_nhwc, 3, 1, 1)
    y2, st2 = _conv_matmul_stats(cols2, params["w2"], tile_m, splits, mp)
    s2, t2 = _fold_bn(st2, params["g2"], params["beta2"], m)
    out = _bn_apply(y2, s2, t2, tile_m, act=True, shortcut=sc,
                    out_dtype=jnp.float32)

    out = out[:m, :cout].reshape(n_, ho, wo, cout)
    return jnp.transpose(out, (0, 3, 1, 2))                  # NHWC -> NCHW


# ---------------------------------------------------------------------------
if __name__ == "__main__":
    key = jax.random.PRNGKey(0)
    k_x, k_p1, k_p2 = jax.random.split(key, 3)

    # case 1: downsample=True (conv+BN shortcut), in=4, out=8, 16x16 -> 8x8
    x = jax.random.normal(k_x, (2, 4, 16, 16), jnp.float32)
    params_ds = init_params(k_p1, in_channels=4, out_channels=8, downsample=True)
    fwd_ds = jax.jit(functools.partial(res_block_forward, downsample=True))
    y_ds = jax.block_until_ready(fwd_ds(x, params_ds))
    assert y_ds.shape == (2, 8, 8, 8), y_ds.shape

    # case 2: downsample=False (identity shortcut), in=out=4, 16x16 -> 16x16
    params_id = init_params(k_p2, in_channels=4, out_channels=4, downsample=False)
    fwd_id = jax.jit(functools.partial(res_block_forward, downsample=False))
    y_id = jax.block_until_ready(fwd_id(x, params_id))
    assert y_id.shape == (2, 4, 16, 16), y_id.shape

    assert bool(jnp.all(jnp.isfinite(y_ds))) and bool(jnp.all(jnp.isfinite(y_id)))
    print("KERNEL_OK")
</pallas_src>

<mosaic_0001>
module attributes {stable_mosaic.version = 11 : i64} {
  func.func @_conv_stats_kernel(%arg0: i32, %arg1: i32, %arg2: memref<128x48xbf16, #tpu.memory_space<vmem>>, %arg3: memref<48x128xbf16, #tpu.memory_space<vmem>>, %arg4: memref<128x128xbf16, #tpu.memory_space<vmem>>, %arg5: memref<8x128xf32, #tpu.memory_space<vmem>>) attributes {dimension_semantics = [#tpu.dimension_semantics<parallel>, #tpu.dimension_semantics<arbitrary>], iteration_bounds = array<i64: 1, 1>, scalar_prefetch = 0 : i64, scratch_operands = 0 : i64, tpu.core_type = #tpu.core_type<tc>, window_params = [{transform_indices = @transform_0, window_bounds = array<i64: 128, 48>}, {pipeline_mode = #tpu.pipeline_mode<synchronous>, transform_indices = @transform_1, window_bounds = array<i64: 48, 128>}, {transform_indices = @transform_2, window_bounds = array<i64: 128, 128>}, {transform_indices = @transform_3, window_bounds = array<i64: 8, 128>}]} {
    %c0 = arith.constant 0 : index
    %c0_0 = arith.constant 0 : index
    %0 = vector.load %arg2[%c0, %c0_0] : memref<128x48xbf16, #tpu.memory_space<vmem>>, vector<128x48xbf16>
    %c0_1 = arith.constant 0 : index
    %c0_2 = arith.constant 0 : index
    %1 = vector.load %arg3[%c0_1, %c0_2] : memref<48x128xbf16, #tpu.memory_space<vmem>>, vector<48x128xbf16>
    %cst = arith.constant dense<0.000000e+00> : vector<128x128xf32>
    %2 = tpu.matmul %0, %1, %cst {dimension_numbers = #tpu.dot_dimension_numbers<[1], [0], [0], [1], [0, 0, 1, 1], [], []>} : vector<128x48xbf16>, vector<48x128xbf16>, vector<128x128xf32> -> vector<128x128xf32>
    %3 = arith.truncf %2 : vector<128x128xf32> to vector<128x128xbf16>
    %c0_3 = arith.constant 0 : index
    %c0_4 = arith.constant 0 : index
    %4 = vector.load %arg4[%c0_3, %c0_4] : memref<128x128xbf16, #tpu.memory_space<vmem>>, vector<128x128xbf16>
    tpu.vector_store %arg4[%c0_3, %c0_4], %3 {strides = array<i32>} : memref<128x128xbf16, #tpu.memory_space<vmem>>, vector<128x128xbf16>,
    %cst_5 = arith.constant dense<0.000000e+00> : vector<128xf32>
    %5 = vector.multi_reduction <add>, %2, %cst_5 [0] : vector<128x128xf32> to vector<128xf32>
    %6 = vector.shape_cast %5 : vector<128xf32> to vector<1x128xf32>
    %7 = arith.mulf %2, %2 : vector<128x128xf32>
    %cst_6 = arith.constant dense<0.000000e+00> : vector<128xf32>
    %8 = vector.multi_reduction <add>, %7, %cst_6 [0] : vector<128x128xf32> to vector<128xf32>
    %9 = vector.shape_cast %8 : vector<128xf32> to vector<1x128xf32>
    %cst_7 = arith.constant 0.000000e+00 : f32
    %10 = vector.broadcast %cst_7 : f32 to vector<6x128xf32>
    %11 = tpu.concatenate %6, %9, %10 in 0 : vector<1x128xf32>, vector<1x128xf32>, vector<6x128xf32> -> vector<8x128xf32>
    %c0_i32 = arith.constant 0 : i32
    %12 = arith.cmpi eq, %arg1, %c0_i32 : i32
    %13 = arith.extui %12 : i1 to i32
    %c0_i32_8 = arith.constant 0 : i32
    %14 = arith.cmpi ne, %13, %c0_i32_8 : i32
    scf.if %14 {
      %cst_13 = arith.constant 0.000000e+00 : f32
      %18 = vector.broadcast %cst_13 : f32 to vector<8x128xf32>
      %c0_14 = arith.constant 0 : index
      %c0_15 = arith.constant 0 : index
      %19 = vector.load %arg5[%c0_14, %c0_15] : memref<8x128xf32, #tpu.memory_space<vmem>>, vector<8x128xf32>
      tpu.vector_store %arg5[%c0_14, %c0_15], %18 {strides = array<i32>} : memref<8x128xf32, #tpu.memory_space<vmem>>, vector<8x128xf32>,
    } else {
    }
    %c0_9 = arith.constant 0 : index
    %c0_10 = arith.constant 0 : index
    %15 = vector.load %arg5[%c0_9, %c0_10] : memref<8x128xf32, #tpu.memory_space<vmem>>, vector<8x128xf32>
    %16 = arith.addf %15, %11 : vector<8x128xf32>
    %c0_11 = arith.constant 0 : index
    %c0_12 = arith.constant 0 : index
    %17 = vector.load %arg5[%c0_11, %c0_12] : memref<8x128xf32, #tpu.memory_space<vmem>>, vector<8x128xf32>
    tpu.vector_store %arg5[%c0_11, %c0_12], %16 {strides = array<i32>} : memref<8x128xf32, #tpu.memory_space<vmem>>, vector<8x128xf32>,
    return
  }
  func.func @transform_0(%arg0: i32, %arg1: i32) -> (i32, i32) {
    %c1_i32 = arith.constant 1 : i32
    %0 = arith.muli %arg0, %c1_i32 : i32
    %1 = arith.addi %0, %arg1 : i32
    %c0_i32 = arith.constant 0 : i32
    %c0_i32_0 = arith.constant 0 : i32
    return %1, %c0_i32 : i32, i32
  }
  func.func @transform_1(%arg0: i32, %arg1: i32) -> (i32, i32) {
    %c0_i32 = arith.constant 0 : i32
    %c0_i32_0 = arith.constant 0 : i32
    %c0_i32_1 = arith.constant 0 : i32
    return %c0_i32, %c0_i32_0 : i32, i32
  }
  func.func @transform_2(%arg0: i32, %arg1: i32) -> (i32, i32) {
    %c1_i32 = arith.constant 1 : i32
    %0 = arith.muli %arg0, %c1_i32 : i32
    %1 = arith.addi %0, %arg1 : i32
    %c0_i32 = arith.constant 0 : i32
    %c0_i32_0 = arith.constant 0 : i32
    return %1, %c0_i32 : i32, i32
  }
  func.func @transform_3(%arg0: i32, %arg1: i32) -> (i32, i32) {
    %c0_i32 = arith.constant 0 : i32
    %c0_i32_0 = arith.constant 0 : i32
    return %arg0, %c0_i32 : i32, i32
  }
}

module attributes {stable_mosaic.version = 11 : i64} {
  func.func @_bn_act_kernel(%arg0: i32, %arg1: memref<128x128xbf16, #tpu.memory_space<vmem>>, %arg2: memref<1x128xf32, #tpu.memory_space<vmem>>, %arg3: memref<1x128xf32, #tpu.memory_space<vmem>>, %arg4: memref<128x128xbf16, #tpu.memory_space<vmem>>) attributes {dimension_semantics = [#tpu.dimension_semantics<parallel>], iteration_bounds = array<i64: 1>, scalar_prefetch = 0 : i64, scratch_operands = 0 : i64, tpu.core_type = #tpu.core_type<tc>, window_params = [{transform_indices = @transform_0, window_bounds = array<i64: 128, 128>}, {pipeline_mode = #tpu.pipeline_mode<synchronous>, transform_indices = @transform_1, window_bounds = array<i64: 1, 128>}, {pipeline_mode = #tpu.pipeline_mode<synchronous>, transform_indices = @transform_2, window_bounds = array<i64: 1, 128>}, {transform_indices = @transform_3, window_bounds = array<i64: 128, 128>}]} {
    %c0 = arith.constant 0 : index
    %c0_0 = arith.constant 0 : index
    %0 = vector.load %arg1[%c0, %c0_0] : memref<128x128xbf16, #tpu.memory_space<vmem>>, vector<128x128xbf16>
    %1 = arith.extf %0 : vector<128x128xbf16> to vector<128x128xf32>
    %c0_1 = arith.constant 0 : index
    %c0_2 = arith.constant 0 : index
    %2 = vector.load %arg2[%c0_1, %c0_2] : memref<1x128xf32, #tpu.memory_space<vmem>>, vector<1x128xf32>
    %3 = vector.broadcast %2 : vector<1x128xf32> to vector<128x128xf32>
    %4 = arith.mulf %1, %3 : vector<128x128xf32>
    %c0_3 = arith.constant 0 : index
    %c0_4 = arith.constant 0 : index
    %5 = vector.load %arg3[%c0_3, %c0_4] : memref<1x128xf32, #tpu.memory_space<vmem>>, vector<1x128xf32>
    %6 = vector.broadcast %5 : vector<1x128xf32> to vector<128x128xf32>
    %7 = arith.addf %4, %6 : vector<128x128xf32>
    %cst = arith.constant 0.000000e+00 : f32
    %8 = vector.broadcast %cst : f32 to vector<128x128xf32>
    %9 = arith.cmpf ogt, %7, %8 : vector<128x128xf32>
    %cst_5 = arith.constant 0.00999999977 : f32
    %10 = vector.broadcast %cst_5 : f32 to vector<128x128xf32>
    %11 = arith.mulf %10, %7 : vector<128x128xf32>
    %12 = arith.select %9, %7, %11 : vector<128x128xi1>, vector<128x128xf32>
    %13 = arith.truncf %12 : vector<128x128xf32> to vector<128x128xbf16>
    %c0_6 = arith.constant 0 : index
    %c0_7 = arith.constant 0 : index
    %14 = vector.load %arg4[%c0_6, %c0_7] : memref<128x128xbf16, #tpu.memory_space<vmem>>, vector<128x128xbf16>
    tpu.vector_store %arg4[%c0_6, %c0_7], %13 {strides = array<i32>} : memref<128x128xbf16, #tpu.memory_space<vmem>>, vector<128x128xbf16>,
    return
  }
  func.func @transform_0(%arg0: i32) -> (i32, i32) {
    %c0_i32 = arith.constant 0 : i32
    %c0_i32_0 = arith.constant 0 : i32
    return %arg0, %c0_i32 : i32, i32
  }
  func.func @transform_1(%arg0: i32) -> (i32, i32) {
    %c0_i32 = arith.constant 0 : i32
    %c0_i32_0 = arith.constant 0 : i32
    %c0_i32_1 = arith.constant 0 : i32
    return %c0_i32, %c0_i32_0 : i32, i32
  }
  func.func @transform_2(%arg0: i32) -> (i32, i32) {
    %c0_i32 = arith.constant 0 : i32
    %c0_i32_0 = arith.constant 0 : i32
    %c0_i32_1 = arith.constant 0 : i32
    return %c0_i32, %c0_i32_0 : i32, i32
  }
  func.func @transform_3(%arg0: i32) -> (i32, i32) {
    %c0_i32 = arith.constant 0 : i32
    %c0_i32_0 = arith.constant 0 : i32
    return %arg0, %c0_i32 : i32, i32
  }
}

module attributes {stable_mosaic.version = 11 : i64} {
  func.func @_conv_stats_kernel(%arg0: i32, %arg1: i32, %arg2: memref<128x80xbf16, #tpu.memory_space<vmem>>, %arg3: memref<80x128xbf16, #tpu.memory_space<vmem>>, %arg4: memref<128x128xbf16, #tpu.memory_space<vmem>>, %arg5: memref<8x128xf32, #tpu.memory_space<vmem>>) attributes {dimension_semantics = [#tpu.dimension_semantics<parallel>, #tpu.dimension_semantics<arbitrary>], iteration_bounds = array<i64: 1, 1>, scalar_prefetch = 0 : i64, scratch_operands = 0 : i64, tpu.core_type = #tpu.core_type<tc>, window_params = [{transform_indices = @transform_0, window_bounds = array<i64: 128, 80>}, {pipeline_mode = #tpu.pipeline_mode<synchronous>, transform_indices = @transform_1, window_bounds = array<i64: 80, 128>}, {transform_indices = @transform_2, window_bounds = array<i64: 128, 128>}, {transform_indices = @transform_3, window_bounds = array<i64: 8, 128>}]} {
    %c0 = arith.constant 0 : index
    %c0_0 = arith.constant 0 : index
    %0 = vector.load %arg2[%c0, %c0_0] : memref<128x80xbf16, #tpu.memory_space<vmem>>, vector<128x80xbf16>
    %c0_1 = arith.constant 0 : index
    %c0_2 = arith.constant 0 : index
    %1 = vector.load %arg3[%c0_1, %c0_2] : memref<80x128xbf16, #tpu.memory_space<vmem>>, vector<80x128xbf16>
    %cst = arith.constant dense<0.000000e+00> : vector<128x128xf32>
    %2 = tpu.matmul %0, %1, %cst {dimension_numbers = #tpu.dot_dimension_numbers<[1], [0], [0], [1], [0, 0, 1, 1], [], []>} : vector<128x80xbf16>, vector<80x128xbf16>, vector<128x128xf32> -> vector<128x128xf32>
    %3 = arith.truncf %2 : vector<128x128xf32> to vector<128x128xbf16>
    %c0_3 = arith.constant 0 : index
    %c0_4 = arith.constant 0 : index
    %4 = vector.load %arg4[%c0_3, %c0_4] : memref<128x128xbf16, #tpu.memory_space<vmem>>, vector<128x128xbf16>
    tpu.vector_store %arg4[%c0_3, %c0_4], %3 {strides = array<i32>} : memref<128x128xbf16, #tpu.memory_space<vmem>>, vector<128x128xbf16>,
    %cst_5 = arith.constant dense<0.000000e+00> : vector<128xf32>
    %5 = vector.multi_reduction <add>, %2, %cst_5 [0] : vector<128x128xf32> to vector<128xf32>
    %6 = vector.shape_cast %5 : vector<128xf32> to vector<1x128xf32>
    %7 = arith.mulf %2, %2 : vector<128x128xf32>
    %cst_6 = arith.constant dense<0.000000e+00> : vector<128xf32>
    %8 = vector.multi_reduction <add>, %7, %cst_6 [0] : vector<128x128xf32> to vector<128xf32>
    %9 = vector.shape_cast %8 : vector<128xf32> to vector<1x128xf32>
    %cst_7 = arith.constant 0.000000e+00 : f32
    %10 = vector.broadcast %cst_7 : f32 to vector<6x128xf32>
    %11 = tpu.concatenate %6, %9, %10 in 0 : vector<1x128xf32>, vector<1x128xf32>, vector<6x128xf32> -> vector<8x128xf32>
    %c0_i32 = arith.constant 0 : i32
    %12 = arith.cmpi eq, %arg1, %c0_i32 : i32
    %13 = arith.extui %12 : i1 to i32
    %c0_i32_8 = arith.constant 0 : i32
    %14 = arith.cmpi ne, %13, %c0_i32_8 : i32
    scf.if %14 {
      %cst_13 = arith.constant 0.000000e+00 : f32
      %18 = vector.broadcast %cst_13 : f32 to vector<8x128xf32>
      %c0_14 = arith.constant 0 : index
      %c0_15 = arith.constant 0 : index
      %19 = vector.load %arg5[%c0_14, %c0_15] : memref<8x128xf32, #tpu.memory_space<vmem>>, vector<8x128xf32>
      tpu.vector_store %arg5[%c0_14, %c0_15], %18 {strides = array<i32>} : memref<8x128xf32, #tpu.memory_space<vmem>>, vector<8x128xf32>,
    } else {
    }
    %c0_9 = arith.constant 0 : index
    %c0_10 = arith.constant 0 : index
    %15 = vector.load %arg5[%c0_9, %c0_10] : memref<8x128xf32, #tpu.memory_space<vmem>>, vector<8x128xf32>
    %16 = arith.addf %15, %11 : vector<8x128xf32>
    %c0_11 = arith.constant 0 : index
    %c0_12 = arith.constant 0 : index
    %17 = vector.load %arg5[%c0_11, %c0_12] : memref<8x128xf32, #tpu.memory_space<vmem>>, vector<8x128xf32>
    tpu.vector_store %arg5[%c0_11, %c0_12], %16 {strides = array<i32>} : memref<8x128xf32, #tpu.memory_space<vmem>>, vector<8x128xf32>,
    return
  }
  func.func @transform_0(%arg0: i32, %arg1: i32) -> (i32, i32) {
    %c1_i32 = arith.constant 1 : i32
    %0 = arith.muli %arg0, %c1_i32 : i32
    %1 = arith.addi %0, %arg1 : i32
    %c0_i32 = arith.constant 0 : i32
    %c0_i32_0 = arith.constant 0 : i32
    return %1, %c0_i32 : i32, i32
  }
  func.func @transform_1(%arg0: i32, %arg1: i32) -> (i32, i32) {
    %c0_i32 = arith.constant 0 : i32
    %c0_i32_0 = arith.constant 0 : i32
    %c0_i32_1 = arith.constant 0 : i32
    return %c0_i32, %c0_i32_0 : i32, i32
  }
  func.func @transform_2(%arg0: i32, %arg1: i32) -> (i32, i32) {
    %c1_i32 = arith.constant 1 : i32
    %0 = arith.muli %arg0, %c1_i32 : i32
    %1 = arith.addi %0, %arg1 : i32
    %c0_i32 = arith.constant 0 : i32
    %c0_i32_0 = arith.constant 0 : i32
    return %1, %c0_i32 : i32, i32
  }
  func.func @transform_3(%arg0: i32, %arg1: i32) -> (i32, i32) {
    %c0_i32 = arith.constant 0 : i32
    %c0_i32_0 = arith.constant 0 : i32
    return %arg0, %c0_i32 : i32, i32
  }
}

module attributes {stable_mosaic.version = 11 : i64} {
  func.func @_bn_act_kernel(%arg0: i32, %arg1: memref<128x128xbf16, #tpu.memory_space<vmem>>, %arg2: memref<1x128xf32, #tpu.memory_space<vmem>>, %arg3: memref<1x128xf32, #tpu.memory_space<vmem>>, %arg4: memref<128x128xbf16, #tpu.memory_space<vmem>>) attributes {dimension_semantics = [#tpu.dimension_semantics<parallel>], iteration_bounds = array<i64: 1>, scalar_prefetch = 0 : i64, scratch_operands = 0 : i64, tpu.core_type = #tpu.core_type<tc>, window_params = [{transform_indices = @transform_0, window_bounds = array<i64: 128, 128>}, {pipeline_mode = #tpu.pipeline_mode<synchronous>, transform_indices = @transform_1, window_bounds = array<i64: 1, 128>}, {pipeline_mode = #tpu.pipeline_mode<synchronous>, transform_indices = @transform_2, window_bounds = array<i64: 1, 128>}, {transform_indices = @transform_3, window_bounds = array<i64: 128, 128>}]} {
    %c0 = arith.constant 0 : index
    %c0_0 = arith.constant 0 : index
    %0 = vector.load %arg1[%c0, %c0_0] : memref<128x128xbf16, #tpu.memory_space<vmem>>, vector<128x128xbf16>
    %1 = arith.extf %0 : vector<128x128xbf16> to vector<128x128xf32>
    %c0_1 = arith.constant 0 : index
    %c0_2 = arith.constant 0 : index
    %2 = vector.load %arg2[%c0_1, %c0_2] : memref<1x128xf32, #tpu.memory_space<vmem>>, vector<1x128xf32>
    %3 = vector.broadcast %2 : vector<1x128xf32> to vector<128x128xf32>
    %4 = arith.mulf %1, %3 : vector<128x128xf32>
    %c0_3 = arith.constant 0 : index
    %c0_4 = arith.constant 0 : index
    %5 = vector.load %arg3[%c0_3, %c0_4] : memref<1x128xf32, #tpu.memory_space<vmem>>, vector<1x128xf32>
    %6 = vector.broadcast %5 : vector<1x128xf32> to vector<128x128xf32>
    %7 = arith.addf %4, %6 : vector<128x128xf32>
    %8 = arith.truncf %7 : vector<128x128xf32> to vector<128x128xbf16>
    %c0_5 = arith.constant 0 : index
    %c0_6 = arith.constant 0 : index
    %9 = vector.load %arg4[%c0_5, %c0_6] : memref<128x128xbf16, #tpu.memory_space<vmem>>, vector<128x128xbf16>
    tpu.vector_store %arg4[%c0_5, %c0_6], %8 {strides = array<i32>} : memref<128x128xbf16, #tpu.memory_space<vmem>>, vector<128x128xbf16>,
    return
  }
  func.func @transform_0(%arg0: i32) -> (i32, i32) {
    %c0_i32 = arith.constant 0 : i32
    %c0_i32_0 = arith.constant 0 : i32
    return %arg0, %c0_i32 : i32, i32
  }
  func.func @transform_1(%arg0: i32) -> (i32, i32) {
    %c0_i32 = arith.constant 0 : i32
    %c0_i32_0 = arith.constant 0 : i32
    %c0_i32_1 = arith.constant 0 : i32
    return %c0_i32, %c0_i32_0 : i32, i32
  }
  func.func @transform_2(%arg0: i32) -> (i32, i32) {
    %c0_i32 = arith.constant 0 : i32
    %c0_i32_0 = arith.constant 0 : i32
    %c0_i32_1 = arith.constant 0 : i32
    return %c0_i32, %c0_i32_0 : i32, i32
  }
  func.func @transform_3(%arg0: i32) -> (i32, i32) {
    %c0_i32 = arith.constant 0 : i32
    %c0_i32_0 = arith.constant 0 : i32
    return %arg0, %c0_i32 : i32, i32
  }
}

module attributes {stable_mosaic.version = 11 : i64} {
  func.func @_bn_act_add_act_kernel(%arg0: i32, %arg1: memref<128x128xbf16, #tpu.memory_space<vmem>>, %arg2: memref<1x128xf32, #tpu.memory_space<vmem>>, %arg3: memref<1x128xf32, #tpu.memory_space<vmem>>, %arg4: memref<128x128xbf16, #tpu.memory_space<vmem>>, %arg5: memref<128x128xf32, #tpu.memory_space<vmem>>) attributes {dimension_semantics = [#tpu.dimension_semantics<parallel>], iteration_bounds = array<i64: 1>, scalar_prefetch = 0 : i64, scratch_operands = 0 : i64, tpu.core_type = #tpu.core_type<tc>, window_params = [{transform_indices = @transform_0, window_bounds = array<i64: 128, 128>}, {pipeline_mode = #tpu.pipeline_mode<synchronous>, transform_indices = @transform_1, window_bounds = array<i64: 1, 128>}, {pipeline_mode = #tpu.pipeline_mode<synchronous>, transform_indices = @transform_2, window_bounds = array<i64: 1, 128>}, {transform_indices = @transform_3, window_bounds = array<i64: 128, 128>}, {transform_indices = @transform_4, window_bounds = array<i64: 128, 128>}]} {
    %c0 = arith.constant 0 : index
    %c0_0 = arith.constant 0 : index
    %0 = vector.load %arg1[%c0, %c0_0] : memref<128x128xbf16, #tpu.memory_space<vmem>>, vector<128x128xbf16>
    %1 = arith.extf %0 : vector<128x128xbf16> to vector<128x128xf32>
    %c0_1 = arith.constant 0 : index
    %c0_2 = arith.constant 0 : index
    %2 = vector.load %arg2[%c0_1, %c0_2] : memref<1x128xf32, #tpu.memory_space<vmem>>, vector<1x128xf32>
    %3 = vector.broadcast %2 : vector<1x128xf32> to vector<128x128xf32>
    %4 = arith.mulf %1, %3 : vector<128x128xf32>
    %c0_3 = arith.constant 0 : index
    %c0_4 = arith.constant 0 : index
    %5 = vector.load %arg3[%c0_3, %c0_4] : memref<1x128xf32, #tpu.memory_space<vmem>>, vector<1x128xf32>
    %6 = vector.broadcast %5 : vector<1x128xf32> to vector<128x128xf32>
    %7 = arith.addf %4, %6 : vector<128x128xf32>
    %cst = arith.constant 0.000000e+00 : f32
    %8 = vector.broadcast %cst : f32 to vector<128x128xf32>
    %9 = arith.cmpf ogt, %7, %8 : vector<128x128xf32>
    %cst_5 = arith.constant 0.00999999977 : f32
    %10 = vector.broadcast %cst_5 : f32 to vector<128x128xf32>
    %11 = arith.mulf %10, %7 : vector<128x128xf32>
    %12 = arith.select %9, %7, %11 : vector<128x128xi1>, vector<128x128xf32>
    %c0_6 = arith.constant 0 : index
    %c0_7 = arith.constant 0 : index
    %13 = vector.load %arg4[%c0_6, %c0_7] : memref<128x128xbf16, #tpu.memory_space<vmem>>, vector<128x128xbf16>
    %14 = arith.extf %13 : vector<128x128xbf16> to vector<128x128xf32>
    %15 = arith.addf %12, %14 : vector<128x128xf32>
    %cst_8 = arith.constant 0.000000e+00 : f32
    %16 = vector.broadcast %cst_8 : f32 to vector<128x128xf32>
    %17 = arith.cmpf ogt, %15, %16 : vector<128x128xf32>
    %cst_9 = arith.constant 0.00999999977 : f32
    %18 = vector.broadcast %cst_9 : f32 to vector<128x128xf32>
    %19 = arith.mulf %18, %15 : vector<128x128xf32>
    %20 = arith.select %17, %15, %19 : vector<128x128xi1>, vector<128x128xf32>
    %c0_10 = arith.constant 0 : index
    %c0_11 = arith.constant 0 : index
    %21 = vector.load %arg5[%c0_10, %c0_11] : memref<128x128xf32, #tpu.memory_space<vmem>>, vector<128x128xf32>
    tpu.vector_store %arg5[%c0_10, %c0_11], %20 {strides = array<i32>} : memref<128x128xf32, #tpu.memory_space<vmem>>, vector<128x128xf32>,
    return
  }
  func.func @transform_0(%arg0: i32) -> (i32, i32) {
    %c0_i32 = arith.constant 0 : i32
    %c0_i32_0 = arith.constant 0 : i32
    return %arg0, %c0_i32 : i32, i32
  }
  func.func @transform_1(%arg0: i32) -> (i32, i32) {
    %c0_i32 = arith.constant 0 : i32
    %c0_i32_0 = arith.constant 0 : i32
    %c0_i32_1 = arith.constant 0 : i32
    return %c0_i32, %c0_i32_0 : i32, i32
  }
  func.func @transform_2(%arg0: i32) -> (i32, i32) {
    %c0_i32 = arith.constant 0 : i32
    %c0_i32_0 = arith.constant 0 : i32
    %c0_i32_1 = arith.constant 0 : i32
    return %c0_i32, %c0_i32_0 : i32, i32
  }
  func.func @transform_3(%arg0: i32) -> (i32, i32) {
    %c0_i32 = arith.constant 0 : i32
    %c0_i32_0 = arith.constant 0 : i32
    return %arg0, %c0_i32 : i32, i32
  }
  func.func @transform_4(%arg0: i32) -> (i32, i32) {
    %c0_i32 = arith.constant 0 : i32
    %c0_i32_0 = arith.constant 0 : i32
    return %arg0, %c0_i32 : i32, i32
  }
}

module attributes {stable_mosaic.version = 11 : i64} {
  func.func @_conv_stats_kernel(%arg0: i32, %arg1: i32, %arg2: memref<128x16xbf16, #tpu.memory_space<vmem>>, %arg3: memref<16x128xbf16, #tpu.memory_space<vmem>>, %arg4: memref<128x128xbf16, #tpu.memory_space<vmem>>, %arg5: memref<8x128xf32, #tpu.memory_space<vmem>>) attributes {dimension_semantics = [#tpu.dimension_semantics<parallel>, #tpu.dimension_semantics<arbitrary>], iteration_bounds = array<i64: 1, 1>, scalar_prefetch = 0 : i64, scratch_operands = 0 : i64, tpu.core_type = #tpu.core_type<tc>, window_params = [{transform_indices = @transform_0, window_bounds = array<i64: 128, 16>}, {pipeline_mode = #tpu.pipeline_mode<synchronous>, transform_indices = @transform_1, window_bounds = array<i64: 16, 128>}, {transform_indices = @transform_2, window_bounds = array<i64: 128, 128>}, {transform_indices = @transform_3, window_bounds = array<i64: 8, 128>}]} {
    %c0 = arith.constant 0 : index
    %c0_0 = arith.constant 0 : index
    %0 = vector.load %arg2[%c0, %c0_0] : memref<128x16xbf16, #tpu.memory_space<vmem>>, vector<128x16xbf16>
    %c0_1 = arith.constant 0 : index
    %c0_2 = arith.constant 0 : index
    %1 = vector.load %arg3[%c0_1, %c0_2] : memref<16x128xbf16, #tpu.memory_space<vmem>>, vector<16x128xbf16>
    %cst = arith.constant dense<0.000000e+00> : vector<128x128xf32>
    %2 = tpu.matmul %0, %1, %cst {dimension_numbers = #tpu.dot_dimension_numbers<[1], [0], [0], [1], [0, 0, 1, 1], [], []>} : vector<128x16xbf16>, vector<16x128xbf16>, vector<128x128xf32> -> vector<128x128xf32>
    %3 = arith.truncf %2 : vector<128x128xf32> to vector<128x128xbf16>
    %c0_3 = arith.constant 0 : index
    %c0_4 = arith.constant 0 : index
    %4 = vector.load %arg4[%c0_3, %c0_4] : memref<128x128xbf16, #tpu.memory_space<vmem>>, vector<128x128xbf16>
    tpu.vector_store %arg4[%c0_3, %c0_4], %3 {strides = array<i32>} : memref<128x128xbf16, #tpu.memory_space<vmem>>, vector<128x128xbf16>,
    %cst_5 = arith.constant dense<0.000000e+00> : vector<128xf32>
    %5 = vector.multi_reduction <add>, %2, %cst_5 [0] : vector<128x128xf32> to vector<128xf32>
    %6 = vector.shape_cast %5 : vector<128xf32> to vector<1x128xf32>
    %7 = arith.mulf %2, %2 : vector<128x128xf32>
    %cst_6 = arith.constant dense<0.000000e+00> : vector<128xf32>
    %8 = vector.multi_reduction <add>, %7, %cst_6 [0] : vector<128x128xf32> to vector<128xf32>
    %9 = vector.shape_cast %8 : vector<128xf32> to vector<1x128xf32>
    %cst_7 = arith.constant 0.000000e+00 : f32
    %10 = vector.broadcast %cst_7 : f32 to vector<6x128xf32>
    %11 = tpu.concatenate %6, %9, %10 in 0 : vector<1x128xf32>, vector<1x128xf32>, vector<6x128xf32> -> vector<8x128xf32>
    %c0_i32 = arith.constant 0 : i32
    %12 = arith.cmpi eq, %arg1, %c0_i32 : i32
    %13 = arith.extui %12 : i1 to i32
    %c0_i32_8 = arith.constant 0 : i32
    %14 = arith.cmpi ne, %13, %c0_i32_8 : i32
    scf.if %14 {
      %cst_13 = arith.constant 0.000000e+00 : f32
      %18 = vector.broadcast %cst_13 : f32 to vector<8x128xf32>
      %c0_14 = arith.constant 0 : index
      %c0_15 = arith.constant 0 : index
      %19 = vector.load %arg5[%c0_14, %c0_15] : memref<8x128xf32, #tpu.memory_space<vmem>>, vector<8x128xf32>
      tpu.vector_store %arg5[%c0_14, %c0_15], %18 {strides = array<i32>} : memref<8x128xf32, #tpu.memory_space<vmem>>, vector<8x128xf32>,
    } else {
    }
    %c0_9 = arith.constant 0 : index
    %c0_10 = arith.constant 0 : index
    %15 = vector.load %arg5[%c0_9, %c0_10] : memref<8x128xf32, #tpu.memory_space<vmem>>, vector<8x128xf32>
    %16 = arith.addf %15, %11 : vector<8x128xf32>
    %c0_11 = arith.constant 0 : index
    %c0_12 = arith.constant 0 : index
    %17 = vector.load %arg5[%c0_11, %c0_12] : memref<8x128xf32, #tpu.memory_space<vmem>>, vector<8x128xf32>
    tpu.vector_store %arg5[%c0_11, %c0_12], %16 {strides = array<i32>} : memref<8x128xf32, #tpu.memory_space<vmem>>, vector<8x128xf32>,
    return
  }
  func.func @transform_0(%arg0: i32, %arg1: i32) -> (i32, i32) {
    %c1_i32 = arith.constant 1 : i32
    %0 = arith.muli %arg0, %c1_i32 : i32
    %1 = arith.addi %0, %arg1 : i32
    %c0_i32 = arith.constant 0 : i32
    %c0_i32_0 = arith.constant 0 : i32
    return %1, %c0_i32 : i32, i32
  }
  func.func @transform_1(%arg0: i32, %arg1: i32) -> (i32, i32) {
    %c0_i32 = arith.constant 0 : i32
    %c0_i32_0 = arith.constant 0 : i32
    %c0_i32_1 = arith.constant 0 : i32
    return %c0_i32, %c0_i32_0 : i32, i32
  }
  func.func @transform_2(%arg0: i32, %arg1: i32) -> (i32, i32) {
    %c1_i32 = arith.constant 1 : i32
    %0 = arith.muli %arg0, %c1_i32 : i32
    %1 = arith.addi %0, %arg1 : i32
    %c0_i32 = arith.constant 0 : i32
    %c0_i32_0 = arith.constant 0 : i32
    return %1, %c0_i32 : i32, i32
  }
  func.func @transform_3(%arg0: i32, %arg1: i32) -> (i32, i32) {
    %c0_i32 = arith.constant 0 : i32
    %c0_i32_0 = arith.constant 0 : i32
    return %arg0, %c0_i32 : i32, i32
  }
}

</mosaic_0001>

<llo_original>
// kernel: res_block_forward.7
$region0: #{res_block_forward.7}
  #allocation0 [shape = 'u32[]', space=smem, size = 0x4, offset = 0x4, fixed_abs, tag = 'smem constant byte address 0x4 - core index']
  #allocation1 [shape = 'u32[144,128]{1,0:T(1,128)}', space=vmem, size = 0x12000, scoped, tag = 'internal scratch']
  %s0 = inlined_call_operand.vmem [shape: bf16[128,128], index: 0, kind: input, shape index: {}]
  %s1 = inlined_call_operand.vmem [shape: f32[1,128], index: 1, kind: input, shape index: {}]
  %s2 = inlined_call_operand.vmem [shape: f32[1,128], index: 2, kind: input, shape index: {}]
  %s3 = inlined_call_operand.vmem [shape: bf16[128,128], index: 3, kind: output, shape index: {}]
  %s4 = sld [smem:[#allocation0]]
  $region22: #{res_block_forward.7} parent=0
    _
  %s6 = ssub.s32 1, %s4
  %s7 = scalar_select 0, %s6, %s4
  // Predicated region
  $region2: #{res_block_forward.7} parent=0 // pred_check
    _
  $region3: #{res_block_forward.7} parent=0 // pred_check_branch
    %9 = sbr.rel (0) target = $region5
  $region4: #{res_block_forward.7} parent=0 // pred_region
    _
  $region5: #{res_block_forward.7} parent=0 // pred_fallthru
    _
  // Predicated region
  $region6: #{res_block_forward.7} parent=0 // pred_check
    _
  $region7: #{res_block_forward.7} parent=0 // pred_check_branch
    %11 = sbr.rel (0) target = $region9
  $region8: #{res_block_forward.7} parent=0 // pred_region
    _
  $region9: #{res_block_forward.7} parent=0 // pred_fallthru
    _
  // Predicated region
  $region10: #{res_block_forward.7} parent=0 // pred_check
    _
  $region11: #{res_block_forward.7} parent=0 // pred_check_branch
    %13 = sbr.rel (0) target = $region13
  $region12: #{res_block_forward.7} parent=0 // pred_region
    _
  $region13: #{res_block_forward.7} parent=0 // pred_fallthru
    _
  %v14 = vld [vmem:[%s0] sm:$0xf]
  %v15 = vld [vmem:[%s0 + $0x4] sm:$0xf]
  %v16 = vld [vmem:[%s0 + $0x8] sm:$0xf]
  %v17 = vld [vmem:[%s0 + $0xc] sm:$0xf]
  %v18 = vld [vmem:[%s0 + $0x10] sm:$0xf]
  %v19 = vld [vmem:[%s0 + $0x14] sm:$0xf]
  %v20 = vld [vmem:[%s0 + $0x18] sm:$0xf]
  %v21 = vld [vmem:[%s0 + $0x1c] sm:$0xf]
  %v22 = vld [vmem:[%s0 + $0x20] sm:$0xf]
  %v23 = vld [vmem:[%s0 + $0x24] sm:$0xf]
  %v24 = vld [vmem:[%s0 + $0x28] sm:$0xf]
  %v25 = vld [vmem:[%s0 + $0x2c] sm:$0xf]
  %v26 = vld [vmem:[%s0 + $0x30] sm:$0xf]
  %v27 = vld [vmem:[%s0 + $0x34] sm:$0xf]
  %v28 = vld [vmem:[%s0 + $0x38] sm:$0xf]
  %v29 = vld [vmem:[%s0 + $0x3c] sm:$0xf]
  %v30 = vunpack.c.l.bf16 %v14
  %v31 = vunpack.c.l.bf16 %v15
  %v32 = vunpack.c.l.bf16 %v16
  %v33 = vunpack.c.l.bf16 %v17
  %v34 = vunpack.c.l.bf16 %v18
  %v35 = vunpack.c.l.bf16 %v19
  %v36 = vunpack.c.l.bf16 %v20
  %v37 = vunpack.c.l.bf16 %v21
  %v38 = vunpack.c.l.bf16 %v22
  %v39 = vunpack.c.l.bf16 %v23
  %v40 = vunpack.c.l.bf16 %v24
  %v41 = vunpack.c.l.bf16 %v25
  %v42 = vunpack.c.l.bf16 %v26
  %v43 = vunpack.c.l.bf16 %v27
  %v44 = vunpack.c.l.bf16 %v28
  %v45 = vunpack.c.l.bf16 %v29
  %v46 = vld [vmem:[%s1] sm:$0x1]
  %v48 = vlaneseq
  %v49 = vshrl.u32 %v48, 7
  %v50 = vsub.s32 0, %v49
  %v51 = vrot.slane %v46, %v50
  %v53 = vmul.f32 %v30, %v51
  %v54 = vmul.f32 %v31, %v51
  %v55 = vmul.f32 %v32, %v51
  %v56 = vmul.f32 %v33, %v51
  %v57 = vmul.f32 %v34, %v51
  %v58 = vmul.f32 %v35, %v51
  %v59 = vmul.f32 %v36, %v51
  %v60 = vmul.f32 %v37, %v51
  %v61 = vmul.f32 %v38, %v51
  %v62 = vmul.f32 %v39, %v51
  %v63 = vmul.f32 %v40, %v51
  %v64 = vmul.f32 %v41, %v51
  %v65 = vmul.f32 %v42, %v51
  %v66 = vmul.f32 %v43, %v51
  %v67 = vmul.f32 %v44, %v51
  %v68 = vmul.f32 %v45, %v51
  %v69 = vld [vmem:[%s2] sm:$0x1]
  %v71 = vlaneseq
  %v72 = vshrl.u32 %v71, 7
  %v73 = vsub.s32 0, %v72
  %v74 = vrot.slane %v69, %v73
  %v76 = vadd.f32 %v53, %v74
  %v77 = vadd.f32 %v54, %v74
  %v78 = vadd.f32 %v55, %v74
  %v79 = vadd.f32 %v56, %v74
  %v80 = vadd.f32 %v57, %v74
  %v81 = vadd.f32 %v58, %v74
  %v82 = vadd.f32 %v59, %v74
  %v83 = vadd.f32 %v60, %v74
  %v84 = vadd.f32 %v61, %v74
  %v85 = vadd.f32 %v62, %v74
  %v86 = vadd.f32 %v63, %v74
  %v87 = vadd.f32 %v64, %v74
  %v88 = vadd.f32 %v65, %v74
  %v89 = vadd.f32 %v66, %v74
  %v90 = vadd.f32 %v67, %v74
  %v91 = vadd.f32 %v68, %v74
  %vm92 = vcmp.gt.f32.partialorder %v76, 0.0
  %vm93 = vcmp.gt.f32.partialorder %v77, 0.0
  %vm94 = vcmp.gt.f32.partialorder %v78, 0.0
  %vm95 = vcmp.gt.f32.partialorder %v79, 0.0
  %vm96 = vcmp.gt.f32.partialorder %v80, 0.0
  %vm97 = vcmp.gt.f32.partialorder %v81, 0.0
  %vm98 = vcmp.gt.f32.partialorder %v82, 0.0
  %vm99 = vcmp.gt.f32.partialorder %v83, 0.0
  %vm100 = vcmp.gt.f32.partialorder %v84, 0.0
  %vm101 = vcmp.gt.f32.partialorder %v85, 0.0
  %vm102 = vcmp.gt.f32.partialorder %v86, 0.0
  %vm103 = vcmp.gt.f32.partialorder %v87, 0.0
  %vm104 = vcmp.gt.f32.partialorder %v88, 0.0
  %vm105 = vcmp.gt.f32.partialorder %v89, 0.0
  %vm106 = vcmp.gt.f32.partialorder %v90, 0.0
  %vm107 = vcmp.gt.f32.partialorder %v91, 0.0
  %v108 = vmul.f32 %v76, 0.01
  %v109 = vmul.f32 %v77, 0.01
  %v110 = vmul.f32 %v78, 0.01
  %v111 = vmul.f32 %v79, 0.01
  %v112 = vmul.f32 %v80, 0.01
  %v113 = vmul.f32 %v81, 0.01
  %v114 = vmul.f32 %v82, 0.01
  %v115 = vmul.f32 %v83, 0.01
  %v116 = vmul.f32 %v84, 0.01
  %v117 = vmul.f32 %v85, 0.01
  %v118 = vmul.f32 %v86, 0.01
  %v119 = vmul.f32 %v87, 0.01
  %v120 = vmul.f32 %v88, 0.01
  %v121 = vmul.f32 %v89, 0.01
  %v122 = vmul.f32 %v90, 0.01
  %v123 = vmul.f32 %v91, 0.01
  %v124 = vsel %vm92, %v76, %v108
  %v125 = vsel %vm93, %v77, %v109
  %v126 = vsel %vm94, %v78, %v110
  %v127 = vsel %vm95, %v79, %v111
  %v128 = vsel %vm96, %v80, %v112
  %v129 = vsel %vm97, %v81, %v113
  %v130 = vsel %vm98, %v82, %v114
  %v131 = vsel %vm99, %v83, %v115
  %v132 = vsel %vm100, %v84, %v116
  %v133 = vsel %vm101, %v85, %v117
  %v134 = vsel %vm102, %v86, %v118
  %v135 = vsel %vm103, %v87, %v119
  %v136 = vsel %vm104, %v88, %v120
  %v137 = vsel %vm105, %v89, %v121
  %v138 = vsel %vm106, %v90, %v122
  %v139 = vsel %vm107, %v91, %v123
  %v140 = vpack.c.bf16 %v125, %v124
  %v141 = vpack.c.bf16 %v127, %v126
  %v142 = vpack.c.bf16 %v129, %v128
  %v143 = vpack.c.bf16 %v131, %v130
  %v144 = vpack.c.bf16 %v133, %v132
  %v145 = vpack.c.bf16 %v135, %v134
  %v146 = vpack.c.bf16 %v137, %v136
  %v147 = vpack.c.bf16 %v139, %v138
  %v156 = vunpack.c.l.b16 %v140
  %v157 = vunpack.c.h.b16 %v140
  %v158 = vunpack.c.l.b16 %v141
  %v159 = vunpack.c.h.b16 %v141
  %v160 = vunpack.c.l.b16 %v142
  %v161 = vunpack.c.h.b16 %v142
  %v162 = vunpack.c.l.b16 %v143
  %v163 = vunpack.c.h.b16 %v143
  %v164 = vunpack.c.l.b16 %v144
  %v165 = vunpack.c.h.b16 %v144
  %v166 = vunpack.c.l.b16 %v145
  %v167 = vunpack.c.h.b16 %v145
  %v168 = vunpack.c.l.b16 %v146
  %v169 = vunpack.c.h.b16 %v146
  %v170 = vunpack.c.l.b16 %v147
  %v171 = vunpack.c.h.b16 %v147
  %v172 = vpack.c.b16 %v156, %v156
  %v173 = vpack.c.b16 %v157, %v157
  %v174 = vpack.c.b16 %v158, %v158
  %v175 = vpack.c.b16 %v159, %v159
  %v176 = vpack.c.b16 %v160, %v160
  %v177 = vpack.c.b16 %v161, %v161
  %v178 = vpack.c.b16 %v162, %v162
  %v179 = vpack.c.b16 %v163, %v163
  %v180 = vpack.c.b16 %v164, %v164
  %v181 = vpack.c.b16 %v165, %v165
  %v182 = vpack.c.b16 %v166, %v166
  %v183 = vpack.c.b16 %v167, %v167
  %v184 = vpack.c.b16 %v168, %v168
  %v185 = vpack.c.b16 %v169, %v169
  %v186 = vpack.c.b16 %v170, %v170
  %v187 = vpack.c.b16 %v171, %v171
  %204 = vst [vmem:[%s3] sm:$0xf] %v172
  %205 = vst [vmem:[%s3 + $0x4] sm:$0xf] %v173
  %206 = vst [vmem:[%s3 + $0x8] sm:$0xf] %v174
  %207 = vst [vmem:[%s3 + $0xc] sm:$0xf] %v175
  %208 = vst [vmem:[%s3 + $0x10] sm:$0xf] %v176
  %209 = vst [vmem:[%s3 + $0x14] sm:$0xf] %v177
  %210 = vst [vmem:[%s3 + $0x18] sm:$0xf] %v178
  %211 = vst [vmem:[%s3 + $0x1c] sm:$0xf] %v179
  %212 = vst [vmem:[%s3 + $0x20] sm:$0xf] %v180
  %213 = vst [vmem:[%s3 + $0x24] sm:$0xf] %v181
  %214 = vst [vmem:[%s3 + $0x28] sm:$0xf] %v182
  %215 = vst [vmem:[%s3 + $0x2c] sm:$0xf] %v183
  %216 = vst [vmem:[%s3 + $0x30] sm:$0xf] %v184
  %217 = vst [vmem:[%s3 + $0x34] sm:$0xf] %v185
  %218 = vst [vmem:[%s3 + $0x38] sm:$0xf] %v186
  %219 = vst [vmem:[%s3 + $0x3c] sm:$0xf] %v187
  // Predicated region
  $region14: #{res_block_forward.7} parent=0 // pred_check
    _
  $region15: #{res_block_forward.7} parent=0 // pred_check_branch
    %221 = sbr.rel (0) target = $region17
  $region16: #{res_block_forward.7} parent=0 // pred_region
    _
  $region17: #{res_block_forward.7} parent=0 // pred_fallthru
    _
  // Predicated region
  $region18: #{res_block_forward.7} parent=0 // pred_check
    _
  $region19: #{res_block_forward.7} parent=0 // pred_check_branch
    %223 = sbr.rel (0) target = $region21
  $region20: #{res_block_forward.7} parent=0 // pred_region
    _
  $region21: #{res_block_forward.7} parent=0 // pred_fallthru
    _

// kernel: res_block_forward.6
$region0: #{res_block_forward.6}
  #allocation0 [shape = 'u32[]', space=smem, size = 0x4, offset = 0x4, fixed_abs, tag = 'smem constant byte address 0x4 - core index']
  #allocation1 [shape = 'u32[144,128]{1,0:T(1,128)}', space=vmem, size = 0x12000, scoped, tag = 'internal scratch']
  %s0 = inlined_call_operand.vmem [shape: bf16[128,48], index: 0, kind: input, shape index: {}]
  %s1 = inlined_call_operand.vmem [shape: bf16[48,128], index: 1, kind: input, shape index: {}]
  %s2 = inlined_call_operand.vmem [shape: bf16[128,128], index: 2, kind: output, shape index: {0}]
  %s3 = inlined_call_operand.vmem [shape: f32[8,128], index: 3, kind: output, shape index: {1}]
  %4 = xla_tuple %s2, %s3
  %s5 = sld [smem:[#allocation0]]
  $region30: #{res_block_forward.6} parent=0
    _
  %s7 = ssub.s32 1, %s5
  %s8 = scalar_select 0, %s7, %s5
  // Predicated region
  $region2: #{res_block_forward.6} parent=0 // pred_check
    _
  $region3: #{res_block_forward.6} parent=0 // pred_check_branch
    %10 = sbr.rel (0) target = $region5
  $region4: #{res_block_forward.6} parent=0 // pred_region
    %s11 = sadd.s32 0, 0
    %s12 = smul.u32 16, %s11
    %p13 = scmp.lt.s32.totalorder %s12, 15
    %s14 = scalar_select %p13, %s12, 15
    %s15 = smul.addr %s14, 4
    %s16 = scalar_lea.vmem %s0, %s15
    %s17 = sadd.s32 0, 0
    %s18 = smul.u32 16, %s17
  $region5: #{res_block_forward.6} parent=0 // pred_fallthru
    _
  // Predicated region
  $region6: #{res_block_forward.6} parent=0 // pred_check
    _
  $region7: #{res_block_forward.6} parent=0 // pred_check_branch
    %20 = sbr.rel (0) target = $region9
  $region8: #{res_block_forward.6} parent=0 // pred_region
    _
  $region9: #{res_block_forward.6} parent=0 // pred_fallthru
    _
  %s21 = sadd.s32 0, 0
  %s22 = smul.u32 16, %s21
  %p23 = scmp.lt.s32.totalorder %s22, 15
  %s24 = scalar_select %p23, %s22, 15
  %s25 = smul.addr %s24, 4
  %s26 = scalar_lea.vmem %s0, %s25
  %s27 = sadd.s32 0, 0
  %s28 = smul.u32 16, %s27
  %p29 = scmp.lt.s32.totalorder %s28, 15
  %s30 = scalar_select %p29, %s28, 15
  %s31 = smul.addr %s30, 4
  %s32 = scalar_lea.vmem %s2, %s31
  %s33 = sadd.s32 0, 0
  %s34 = smul.u32 16, %s33
  %p35 = scmp.lt.s32.totalorder %s34, 15
  %s36 = scalar_select %p35, %s34, 15
  %s37 = smul.addr %s36, 4
  %s38 = scalar_lea.vmem %s0, %s37
  %s39 = sadd.s32 0, 0
  %s40 = smul.u32 16, %s39
  %s41 = sadd.s32 0, 0
  %s42 = smul.u32 16, %s41
  %p43 = scmp.lt.s32.totalorder %s42, 15
  %s44 = scalar_select %p43, %s42, 15
  %s45 = smul.addr %s44, 4
  %s46 = scalar_lea.vmem %s2, %s45
  %s47 = sadd.s32 0, 0
  %s48 = smul.u32 16, %s47
  %v50 = vld [vmem:[%s38] sm:$0xf]
  %v51 = vld [vmem:[%s38 + $0x4] sm:$0xf]
  %v52 = vld [vmem:[%s38 + $0x8] sm:$0xf]
  %v53 = vld [vmem:[%s38 + $0xc] sm:$0xf]
  %v54 = vld [vmem:[%s38 + $0x10] sm:$0xf]
  %v55 = vld [vmem:[%s38 + $0x14] sm:$0xf]
  %v56 = vld [vmem:[%s38 + $0x18] sm:$0xf]
  %v57 = vld [vmem:[%s38 + $0x1c] sm:$0xf]
  %v58 = vld [vmem:[%s38 + $0x20] sm:$0xf]
  %v59 = vld [vmem:[%s38 + $0x24] sm:$0xf]
  %v60 = vld [vmem:[%s38 + $0x28] sm:$0xf]
  %v61 = vld [vmem:[%s38 + $0x2c] sm:$0xf]
  %v62 = vld [vmem:[%s38 + $0x30] sm:$0xf]
  %v63 = vld [vmem:[%s38 + $0x34] sm:$0xf]
  %v64 = vld [vmem:[%s38 + $0x38] sm:$0xf]
  %v65 = vld [vmem:[%s38 + $0x3c] sm:$0xf]
  %v66 = vld [vmem:[%s1] sm:$0xf]
  %v67 = vld [vmem:[%s1 + $0x4] sm:$0xf]
  %v68 = vld [vmem:[%s1 + $0x8] sm:$0xf]
  %v69 = vld [vmem:[%s1 + $0xc] sm:$0xf]
  %v70 = vld [vmem:[%s1 + $0x10] sm:$0xf]
  %v71 = vld [vmem:[%s1 + $0x14] sm:$0xf]
  %v88 = vunpack.c.l.b16 %v50
  %v89 = vunpack.c.l.b16 %v51
  %v90 = vunpack.c.l.b16 %v52
  %v91 = vunpack.c.l.b16 %v53
  %v92 = vunpack.c.l.b16 %v54
  %v93 = vunpack.c.l.b16 %v55
  %v94 = vunpack.c.l.b16 %v56
  %v95 = vunpack.c.l.b16 %v57
  %v96 = vunpack.c.l.b16 %v58
  %v97 = vunpack.c.l.b16 %v59
  %v98 = vunpack.c.l.b16 %v60
  %v99 = vunpack.c.l.b16 %v61
  %v100 = vunpack.c.l.b16 %v62
  %v101 = vunpack.c.l.b16 %v63
  %v102 = vunpack.c.l.b16 %v64
  %v103 = vunpack.c.l.b16 %v65
  %v104 = vpack.c.b16 %v89, %v88
  %v105 = vpack.c.b16 %v91, %v90
  %v106 = vpack.c.b16 %v93, %v92
  %v107 = vpack.c.b16 %v95, %v94
  %v108 = vpack.c.b16 %v97, %v96
  %v109 = vpack.c.b16 %v99, %v98
  %v110 = vpack.c.b16 %v101, %v100
  %v111 = vpack.c.b16 %v103, %v102
  %v118 = vunpack.c.l.b16 %v66
  %v119 = vunpack.c.l.b16 %v67
  %v120 = vunpack.c.l.b16 %v68
  %v121 = vunpack.c.l.b16 %v69
  %v122 = vunpack.c.l.b16 %v70
  %v123 = vunpack.c.l.b16 %v71
  %v124 = vpack.c.b16 %v119, %v118
  %v125 = vpack.c.b16 %v121, %v120
  %v126 = vpack.c.b16 %v123, %v122
  %vm130 = vcmask 392192
  %v132 = vsel %vm130, %v104, 0
  %v135 = vsel %vm130, %v105, 0
  %v138 = vsel %vm130, %v106, 0
  %v141 = vsel %vm130, %v107, 0
  %v144 = vsel %vm130, %v108, 0
  %v147 = vsel %vm130, %v109, 0
  %v150 = vsel %vm130, %v110, 0
  %v153 = vsel %vm130, %v111, 0
  %155 = vmatprep.subr.bf16.mxu0 0
  %156 = vmatpush1.bf16.msra.mxu0 %v124
  %157 = vmatprep.subr.bf16.mxu0 0
  %158 = vmatpush1.bf16.msra.mxu0 %v125
  %159 = vmatprep.subr.bf16.mxu0 0
  %160 = vmatpush1.bf16.msra.mxu0 %v126
  %161 = vmatprep.subr.bf16.mxu0 0
  %162 = vmatpush1.bf16.msra.mxu0 0
  %163 = vmatprep.subr.bf16.mxu0 0
  %164 = vmatpush1.bf16.msra.mxu0 0
  %165 = vmatprep.subr.bf16.mxu0 0
  %166 = vmatpush1.bf16.msra.mxu0 0
  %167 = vmatprep.subr.bf16.mxu0 0
  %168 = vmatpush1.bf16.msra.mxu0 0
  %169 = vmatprep.subr.bf16.mxu0 0
  %170 = vmatpush1.bf16.msra.mxu0 0
  %171 = vmatprep.subr.bf16.mxu0 0
  %172 = vmatpush1.bf16.msra.mxu0 0
  %173 = vmatprep.subr.bf16.mxu0 0
  %174 = vmatpush1.bf16.msra.mxu0 0
  %175 = vmatprep.subr.bf16.mxu0 0
  %176 = vmatpush1.bf16.msra.mxu0 0
  %177 = vmatprep.subr.bf16.mxu0 0
  %178 = vmatpush1.bf16.msra.mxu0 0
  %179 = vmatprep.subr.bf16.mxu0 0
  %180 = vmatpush1.bf16.msra.mxu0 0
  %181 = vmatprep.subr.bf16.mxu0 0
  %182 = vmatpush1.bf16.msra.mxu0 0
  %183 = vmatprep.subr.bf16.mxu0 0
  %184 = vmatpush1.bf16.msra.mxu0 0
  %185 = vmatprep.subr.bf16.mxu0 0
  %186 = vmatpush1.bf16.msra.mxu0 0
  %187 = vmatprep.mubr.bf16.mxu0 0
  %188 = vmatmul.mubr.bf16.gmra.mrb[0].mxu0 %v132
  %v189 = vpop.f32.mrb[0].mxu0
  %v190 = vadd.f32 0.0, %v189
  %v191 = vpop.f32.mrb[0].mxu0
  %v192 = vpop.f32.mrb[0].mxu0
  %v193 = vadd.f32 0.0, %v192
  %v194 = vpop.f32.mrb[0].mxu0
  %195 = vmatprep.mubr.bf16.mxu0 0
  %196 = vmatmul.mubr.bf16.gmra.mrb[0].mxu0 %v135
  %v197 = vpop.f32.mrb[0].mxu0
  %v198 = vadd.f32 0.0, %v197
  %v199 = vpop.f32.mrb[0].mxu0
  %v200 = vpop.f32.mrb[0].mxu0
  %v201 = vadd.f32 0.0, %v200
  %v202 = vpop.f32.mrb[0].mxu0
  %203 = vmatprep.mubr.bf16.mxu0 0
  %204 = vmatmul.mubr.bf16.gmra.mrb[0].mxu0 %v138
  %v205 = vpop.f32.mrb[0].mxu0
  %v206 = vadd.f32 0.0, %v205
  %v207 = vpop.f32.mrb[0].mxu0
  %v208 = vpop.f32.mrb[0].mxu0
  %v209 = vadd.f32 0.0, %v208
  %v210 = vpop.f32.mrb[0].mxu0
  %211 = vmatprep.mubr.bf16.mxu0 0
  %212 = vmatmul.mubr.bf16.gmra.mrb[0].mxu0 %v141
  %v213 = vpop.f32.mrb[0].mxu0
  %v214 = vadd.f32 0.0, %v213
  %v215 = vpop.f32.mrb[0].mxu0
  %v216 = vpop.f32.mrb[0].mxu0
  %v217 = vadd.f32 0.0, %v216
  %v218 = vpop.f32.mrb[0].mxu0
  %219 = vmatprep.mubr.bf16.mxu0 0
  %220 = vmatmul.mubr.bf16.gmra.mrb[0].mxu0 %v144
  %v221 = vpop.f32.mrb[0].mxu0
  %v222 = vadd.f32 0.0, %v221
  %v223 = vpop.f32.mrb[0].mxu0
  %v224 = vpop.f32.mrb[0].mxu0
  %v225 = vadd.f32 0.0, %v224
  %v226 = vpop.f32.mrb[0].mxu0
  %227 = vmatprep.mubr.bf16.mxu0 0
  %228 = vmatmul.mubr.bf16.gmra.mrb[0].mxu0 %v147
  %v229 = vpop.f32.mrb[0].mxu0
  %v230 = vadd.f32 0.0, %v229
  %v231 = vpop.f32.mrb[0].mxu0
  %v232 = vpop.f32.mrb[0].mxu0
  %v233 = vadd.f32 0.0, %v232
  %v234 = vpop.f32.mrb[0].mxu0
  %235 = vmatprep.mubr.bf16.mxu0 0
  %236 = vmatmul.mubr.bf16.gmra.mrb[0].mxu0 %v150
  %v237 = vpop.f32.mrb[0].mxu0
  %v238 = vadd.f32 0.0, %v237
  %v239 = vpop.f32.mrb[0].mxu0
  %v240 = vpop.f32.mrb[0].mxu0
  %v241 = vadd.f32 0.0, %v240
  %v242 = vpop.f32.mrb[0].mxu0
  %243 = vmatprep.mubr.bf16.mxu0 0
  %244 = vmatmul.mubr.bf16.gmra.mrb[0].mxu0 %v153
  %v245 = vpop.f32.mrb[0].mxu0
  %v246 = vadd.f32 0.0, %v245
  %v247 = vpop.f32.mrb[0].mxu0
  %v248 = vpop.f32.mrb[0].mxu0
  %v249 = vadd.f32 0.0, %v248
  %v250 = vpop.f32.mrb[0].mxu0
  %251 = vdwg.mxu0
  %v252 = vpack.c.bf16 %v193, %v190
  %v253 = vpack.c.bf16 %v201, %v198
  %v254 = vpack.c.bf16 %v209, %v206
  %v255 = vpack.c.bf16 %v217, %v214
  %v256 = vpack.c.bf16 %v225, %v222
  %v257 = vpack.c.bf16 %v233, %v230
  %v258 = vpack.c.bf16 %v241, %v238
  %v259 = vpack.c.bf16 %v249, %v246
  %v268 = vunpack.c.l.b16 %v252
  %v269 = vunpack.c.h.b16 %v252
  %v270 = vunpack.c.l.b16 %v253
  %v271 = vunpack.c.h.b16 %v253
  %v272 = vunpack.c.l.b16 %v254
  %v273 = vunpack.c.h.b16 %v254
  %v274 = vunpack.c.l.b16 %v255
  %v275 = vunpack.c.h.b16 %v255
  %v276 = vunpack.c.l.b16 %v256
  %v277 = vunpack.c.h.b16 %v256
  %v278 = vunpack.c.l.b16 %v257
  %v279 = vunpack.c.h.b16 %v257
  %v280 = vunpack.c.l.b16 %v258
  %v281 = vunpack.c.h.b16 %v258
  %v282 = vunpack.c.l.b16 %v259
  %v283 = vunpack.c.h.b16 %v259
  %v284 = vpack.c.b16 %v268, %v268
  %v285 = vpack.c.b16 %v269, %v269
  %v286 = vpack.c.b16 %v270, %v270
  %v287 = vpack.c.b16 %v271, %v271
  %v288 = vpack.c.b16 %v272, %v272
  %v289 = vpack.c.b16 %v273, %v273
  %v290 = vpack.c.b16 %v274, %v274
  %v291 = vpack.c.b16 %v275, %v275
  %v292 = vpack.c.b16 %v276, %v276
  %v293 = vpack.c.b16 %v277, %v277
  %v294 = vpack.c.b16 %v278, %v278
  %v295 = vpack.c.b16 %v279, %v279
  %v296 = vpack.c.b16 %v280, %v280
  %v297 = vpack.c.b16 %v281, %v281
  %v298 = vpack.c.b16 %v282, %v282
  %v299 = vpack.c.b16 %v283, %v283
  %316 = vst [vmem:[%s46] sm:$0xf] %v284
  %317 = vst [vmem:[%s46 + $0x4] sm:$0xf] %v285
  %318 = vst [vmem:[%s46 + $0x8] sm:$0xf] %v286
  %319 = vst [vmem:[%s46 + $0xc] sm:$0xf] %v287
  %320 = vst [vmem:[%s46 + $0x10] sm:$0xf] %v288
  %321 = vst [vmem:[%s46 + $0x14] sm:$0xf] %v289
  %322 = vst [vmem:[%s46 + $0x18] sm:$0xf] %v290
  %323 = vst [vmem:[%s46 + $0x1c] sm:$0xf] %v291
  %324 = vst [vmem:[%s46 + $0x20] sm:$0xf] %v292
  %325 = vst [vmem:[%s46 + $0x24] sm:$0xf] %v293
  %326 = vst [vmem:[%s46 + $0x28] sm:$0xf] %v294
  %327 = vst [vmem:[%s46 + $0x2c] sm:$0xf] %v295
  %328 = vst [vmem:[%s46 + $0x30] sm:$0xf] %v296
  %329 = vst [vmem:[%s46 + $0x34] sm:$0xf] %v297
  %330 = vst [vmem:[%s46 + $0x38] sm:$0xf] %v298
  %331 = vst [vmem:[%s46 + $0x3c] sm:$0xf] %v299
  %v332 = vadd.f32 %v190, %v193
  %v333 = vadd.f32 %v332, %v198
  %v334 = vadd.f32 %v333, %v201
  %v335 = vadd.f32 %v334, %v206
  %v336 = vadd.f32 %v335, %v209
  %v337 = vadd.f32 %v336, %v214
  %v338 = vadd.f32 %v337, %v217
  %v339 = vadd.f32 %v338, %v222
  %v340 = vadd.f32 %v339, %v225
  %v341 = vadd.f32 %v340, %v230
  %v342 = vadd.f32 %v341, %v233
  %v343 = vadd.f32 %v342, %v238
  %v344 = vadd.f32 %v343, %v241
  %v345 = vadd.f32 %v344, %v246
  %v346 = vadd.f32 %v345, %v249
  %v347 = vrot.slane %v346, 4
  %v348 = vadd.f32 %v346, %v347
  %v349 = vrot.slane %v348, 2
  %v350 = vadd.f32 %v348, %v349
  %v351 = vrot.slane %v350, 1
  %v352 = vadd.f32 %v350, %v351
  %v353 = vmul.f32 %v190, %v190
  %v354 = vmul.f32 %v193, %v193
  %v355 = vmul.f32 %v198, %v198
  %v356 = vmul.f32 %v201, %v201
  %v357 = vmul.f32 %v206, %v206
  %v358 = vmul.f32 %v209, %v209
  %v359 = vmul.f32 %v214, %v214
  %v360 = vmul.f32 %v217, %v217
  %v361 = vmul.f32 %v222, %v222
  %v362 = vmul.f32 %v225, %v225
  %v363 = vmul.f32 %v230, %v230
  %v364 = vmul.f32 %v233, %v233
  %v365 = vmul.f32 %v238, %v238
  %v366 = vmul.f32 %v241, %v241
  %v367 = vmul.f32 %v246, %v246
  %v368 = vmul.f32 %v249, %v249
  %v369 = vadd.f32 %v353, %v354
  %v370 = vadd.f32 %v369, %v355
  %v371 = vadd.f32 %v370, %v356
  %v372 = vadd.f32 %v371, %v357
  %v373 = vadd.f32 %v372, %v358
  %v374 = vadd.f32 %v373, %v359
  %v375 = vadd.f32 %v374, %v360
  %v376 = vadd.f32 %v375, %v361
  %v377 = vadd.f32 %v376, %v362
  %v378 = vadd.f32 %v377, %v363
  %v379 = vadd.f32 %v378, %v364
  %v380 = vadd.f32 %v379, %v365
  %v381 = vadd.f32 %v380, %v366
  %v382 = vadd.f32 %v381, %v367
  %v383 = vadd.f32 %v382, %v368
  %v384 = vrot.slane %v383, 4
  %v385 = vadd.f32 %v383, %v384
  %v386 = vrot.slane %v385, 2
  %v387 = vadd.f32 %v385, %v386
  %v388 = vrot.slane %v387, 1
  %v389 = vadd.f32 %v387, %v388
  %vm390 = vcmask 1040384
  %v391 = vsel %vm390, %v352, %v389
  %vm392 = vcmask 1041408
  %v393 = vsel %vm392, %v391, 0.0
  %p394 = scmp.eq.s32.totalorder 0, 0
  // Predicated region
  $region10: #{res_block_forward.6} parent=0 // pred_check
    %p395 = pneg %p394
  $region11: #{res_block_forward.6} parent=0 // pred_check_branch
    %397 = sbr.rel (%p395) target = $region13
  $region12: #{res_block_forward.6} parent=0 // pred_region
    %398 = vst [vmem:[%s3] sm:$0xff] 0.0
  $region13: #{res_block_forward.6} parent=0 // pred_fallthru
    _
  %v399 = vld [vmem:[%s3] sm:$0xff]
  %v400 = vadd.f32 %v399, %v393
  %401 = vst [vmem:[%s3] sm:$0xff] %v400
  %s402 = sadd.s32 0, 0
  %s403 = smul.u32 16, %s402
  %p404 = scmp.lt.s32.totalorder %s403, 15
  %s405 = scalar_select %p404, %s403, 15
  %s406 = smul.addr %s405, 4
  %s407 = scalar_lea.vmem %s2, %s406
  // Predicated region
  $region14: #{res_block_forward.6} parent=0 // pred_check
    _
  $region15: #{res_block_forward.6} parent=0 // pred_check_branch
    %409 = sbr.rel (0) target = $region17
  $region16: #{res_block_forward.6} parent=0 // pred_region
    %s410 = sadd.s32 0, 0
    %s411 = smul.u32 16, %s410
  $region17: #{res_block_forward.6} parent=0 // pred_fallthru
    _
  // Predicated region
  $region18: #{res_block_forward.6} parent=0 // pred_check
    _
  $region19: #{res_block_forward.6} parent=0 // pred_check_branch
    %413 = sbr.rel (0) target = $region21
  $region20: #{res_block_forward.6} parent=0 // pred_region
    _
  $region21: #{res_block_forward.6} parent=0 // pred_fallthru
    _
  // Predicated region
  $region22: #{res_block_forward.6} parent=0 // pred_check
    _
  $region23: #{res_block_forward.6} parent=0 // pred_check_branch
    %415 = sbr.rel (0) target = $region25
  $region24: #{res_block_forward.6} parent=0 // pred_region
    %s416 = sadd.s32 0, 0
    %s417 = smul.u32 16, %s416
    %p418 = scmp.lt.s32.totalorder %s417, 15
    %s419 = scalar_select %p418, %s417, 15
    %s420 = smul.addr %s419, 4
    %s421 = scalar_lea.vmem %s2, %s420
  $region25: #{res_block_forward.6} parent=0 // pred_fallthru
    _
  // Predicated region
  $region26: #{res_block_forward.6} parent=0 // pred_check
    _
  $region27: #{res_block_forward.6} parent=0 // pred_check_branch
    %423 = sbr.rel (0) target = $region29
  $region28: #{res_block_forward.6} parent=0 // pred_region
    _
  $region29: #{res_block_forward.6} parent=0 // pred_fallthru
    _

// kernel: res_block_forward.10
$region0: #{res_block_forward.10}
  #allocation0 [shape = 'u32[]', space=smem, size = 0x4, offset = 0x4, fixed_abs, tag = 'smem constant byte address 0x4 - core index']
  #allocation1 [shape = 'u32[144,128]{1,0:T(1,128)}', space=vmem, size = 0x12000, scoped, tag = 'internal scratch']
  %s0 = inlined_call_operand.vmem [shape: bf16[128,80], index: 0, kind: input, shape index: {}]
  %s1 = inlined_call_operand.vmem [shape: bf16[80,128], index: 1, kind: input, shape index: {}]
  %s2 = inlined_call_operand.vmem [shape: bf16[128,128], index: 2, kind: output, shape index: {0}]
  %s3 = inlined_call_operand.vmem [shape: f32[8,128], index: 3, kind: output, shape index: {1}]
  %4 = xla_tuple %s2, %s3
  %s5 = sld [smem:[#allocation0]]
  $region30: #{res_block_forward.10} parent=0
    _
  %s7 = ssub.s32 1, %s5
  %s8 = scalar_select 0, %s7, %s5
  // Predicated region
  $region2: #{res_block_forward.10} parent=0 // pred_check
    _
  $region3: #{res_block_forward.10} parent=0 // pred_check_branch
    %10 = sbr.rel (0) target = $region5
  $region4: #{res_block_forward.10} parent=0 // pred_region
    %s11 = sadd.s32 0, 0
    %s12 = smul.u32 16, %s11
    %p13 = scmp.lt.s32.totalorder %s12, 15
    %s14 = scalar_select %p13, %s12, 15
    %s15 = smul.addr %s14, 4
    %s16 = scalar_lea.vmem %s0, %s15
    %s17 = sadd.s32 0, 0
    %s18 = smul.u32 16, %s17
  $region5: #{res_block_forward.10} parent=0 // pred_fallthru
    _
  // Predicated region
  $region6: #{res_block_forward.10} parent=0 // pred_check
    _
  $region7: #{res_block_forward.10} parent=0 // pred_check_branch
    %20 = sbr.rel (0) target = $region9
  $region8: #{res_block_forward.10} parent=0 // pred_region
    _
  $region9: #{res_block_forward.10} parent=0 // pred_fallthru
    _
  %s21 = sadd.s32 0, 0
  %s22 = smul.u32 16, %s21
  %p23 = scmp.lt.s32.totalorder %s22, 15
  %s24 = scalar_select %p23, %s22, 15
  %s25 = smul.addr %s24, 4
  %s26 = scalar_lea.vmem %s0, %s25
  %s27 = sadd.s32 0, 0
  %s28 = smul.u32 16, %s27
  %p29 = scmp.lt.s32.totalorder %s28, 15
  %s30 = scalar_select %p29, %s28, 15
  %s31 = smul.addr %s30, 4
  %s32 = scalar_lea.vmem %s2, %s31
  %s33 = sadd.s32 0, 0
  %s34 = smul.u32 16, %s33
  %p35 = scmp.lt.s32.totalorder %s34, 15
  %s36 = scalar_select %p35, %s34, 15
  %s37 = smul.addr %s36, 4
  %s38 = scalar_lea.vmem %s0, %s37
  %s39 = sadd.s32 0, 0
  %s40 = smul.u32 16, %s39
  %s41 = sadd.s32 0, 0
  %s42 = smul.u32 16, %s41
  %p43 = scmp.lt.s32.totalorder %s42, 15
  %s44 = scalar_select %p43, %s42, 15
  %s45 = smul.addr %s44, 4
  %s46 = scalar_lea.vmem %s2, %s45
  %s47 = sadd.s32 0, 0
  %s48 = smul.u32 16, %s47
  %v50 = vld [vmem:[%s38] sm:$0xf]
  %v51 = vld [vmem:[%s38 + $0x4] sm:$0xf]
  %v52 = vld [vmem:[%s38 + $0x8] sm:$0xf]
  %v53 = vld [vmem:[%s38 + $0xc] sm:$0xf]
  %v54 = vld [vmem:[%s38 + $0x10] sm:$0xf]
  %v55 = vld [vmem:[%s38 + $0x14] sm:$0xf]
  %v56 = vld [vmem:[%s38 + $0x18] sm:$0xf]
  %v57 = vld [vmem:[%s38 + $0x1c] sm:$0xf]
  %v58 = vld [vmem:[%s38 + $0x20] sm:$0xf]
  %v59 = vld [vmem:[%s38 + $0x24] sm:$0xf]
  %v60 = vld [vmem:[%s38 + $0x28] sm:$0xf]
  %v61 = vld [vmem:[%s38 + $0x2c] sm:$0xf]
  %v62 = vld [vmem:[%s38 + $0x30] sm:$0xf]
  %v63 = vld [vmem:[%s38 + $0x34] sm:$0xf]
  %v64 = vld [vmem:[%s38 + $0x38] sm:$0xf]
  %v65 = vld [vmem:[%s38 + $0x3c] sm:$0xf]
  %v66 = vld [vmem:[%s1] sm:$0xf]
  %v67 = vld [vmem:[%s1 + $0x4] sm:$0xf]
  %v68 = vld [vmem:[%s1 + $0x8] sm:$0xf]
  %v69 = vld [vmem:[%s1 + $0xc] sm:$0xf]
  %v70 = vld [vmem:[%s1 + $0x10] sm:$0xf]
  %v71 = vld [vmem:[%s1 + $0x14] sm:$0xf]
  %v72 = vld [vmem:[%s1 + $0x18] sm:$0xf]
  %v73 = vld [vmem:[%s1 + $0x1c] sm:$0xf]
  %v74 = vld [vmem:[%s1 + $0x20] sm:$0xf]
  %v75 = vld [vmem:[%s1 + $0x24] sm:$0xf]
  %v92 = vunpack.c.l.b16 %v50
  %v93 = vunpack.c.l.b16 %v51
  %v94 = vunpack.c.l.b16 %v52
  %v95 = vunpack.c.l.b16 %v53
  %v96 = vunpack.c.l.b16 %v54
  %v97 = vunpack.c.l.b16 %v55
  %v98 = vunpack.c.l.b16 %v56
  %v99 = vunpack.c.l.b16 %v57
  %v100 = vunpack.c.l.b16 %v58
  %v101 = vunpack.c.l.b16 %v59
  %v102 = vunpack.c.l.b16 %v60
  %v103 = vunpack.c.l.b16 %v61
  %v104 = vunpack.c.l.b16 %v62
  %v105 = vunpack.c.l.b16 %v63
  %v106 = vunpack.c.l.b16 %v64
  %v107 = vunpack.c.l.b16 %v65
  %v108 = vpack.c.b16 %v93, %v92
  %v109 = vpack.c.b16 %v95, %v94
  %v110 = vpack.c.b16 %v97, %v96
  %v111 = vpack.c.b16 %v99, %v98
  %v112 = vpack.c.b16 %v101, %v100
  %v113 = vpack.c.b16 %v103, %v102
  %v114 = vpack.c.b16 %v105, %v104
  %v115 = vpack.c.b16 %v107, %v106
  %v126 = vunpack.c.l.b16 %v66
  %v127 = vunpack.c.l.b16 %v67
  %v128 = vunpack.c.l.b16 %v68
  %v129 = vunpack.c.l.b16 %v69
  %v130 = vunpack.c.l.b16 %v70
  %v131 = vunpack.c.l.b16 %v71
  %v132 = vunpack.c.l.b16 %v72
  %v133 = vunpack.c.l.b16 %v73
  %v134 = vunpack.c.l.b16 %v74
  %v135 = vunpack.c.l.b16 %v75
  %v136 = vpack.c.b16 %v127, %v126
  %v137 = vpack.c.b16 %v129, %v128
  %v138 = vpack.c.b16 %v131, %v130
  %v139 = vpack.c.b16 %v133, %v132
  %v140 = vpack.c.b16 %v135, %v134
  %vm146 = vcmask 654336
  %v148 = vsel %vm146, %v108, 0
  %v151 = vsel %vm146, %v109, 0
  %v154 = vsel %vm146, %v110, 0
  %v157 = vsel %vm146, %v111, 0
  %v160 = vsel %vm146, %v112, 0
  %v163 = vsel %vm146, %v113, 0
  %v166 = vsel %vm146, %v114, 0
  %v169 = vsel %vm146, %v115, 0
  %171 = vmatprep.subr.bf16.mxu0 0
  %172 = vmatpush1.bf16.msra.mxu0 %v136
  %173 = vmatprep.subr.bf16.mxu0 0
  %174 = vmatpush1.bf16.msra.mxu0 %v137
  %175 = vmatprep.subr.bf16.mxu0 0
  %176 = vmatpush1.bf16.msra.mxu0 %v138
  %177 = vmatprep.subr.bf16.mxu0 0
  %178 = vmatpush1.bf16.msra.mxu0 %v139
  %179 = vmatprep.subr.bf16.mxu0 0
  %180 = vmatpush1.bf16.msra.mxu0 %v140
  %181 = vmatprep.subr.bf16.mxu0 0
  %182 = vmatpush1.bf16.msra.mxu0 0
  %183 = vmatprep.subr.bf16.mxu0 0
  %184 = vmatpush1.bf16.msra.mxu0 0
  %185 = vmatprep.subr.bf16.mxu0 0
  %186 = vmatpush1.bf16.msra.mxu0 0
  %187 = vmatprep.subr.bf16.mxu0 0
  %188 = vmatpush1.bf16.msra.mxu0 0
  %189 = vmatprep.subr.bf16.mxu0 0
  %190 = vmatpush1.bf16.msra.mxu0 0
  %191 = vmatprep.subr.bf16.mxu0 0
  %192 = vmatpush1.bf16.msra.mxu0 0
  %193 = vmatprep.subr.bf16.mxu0 0
  %194 = vmatpush1.bf16.msra.mxu0 0
  %195 = vmatprep.subr.bf16.mxu0 0
  %196 = vmatpush1.bf16.msra.mxu0 0
  %197 = vmatprep.subr.bf16.mxu0 0
  %198 = vmatpush1.bf16.msra.mxu0 0
  %199 = vmatprep.subr.bf16.mxu0 0
  %200 = vmatpush1.bf16.msra.mxu0 0
  %201 = vmatprep.subr.bf16.mxu0 0
  %202 = vmatpush1.bf16.msra.mxu0 0
  %203 = vmatprep.mubr.bf16.mxu0 0
  %204 = vmatmul.mubr.bf16.gmra.mrb[0].mxu0 %v148
  %v205 = vpop.f32.mrb[0].mxu0
  %v206 = vadd.f32 0.0, %v205
  %v207 = vpop.f32.mrb[0].mxu0
  %v208 = vpop.f32.mrb[0].mxu0
  %v209 = vadd.f32 0.0, %v208
  %v210 = vpop.f32.mrb[0].mxu0
  %211 = vmatprep.mubr.bf16.mxu0 0
  %212 = vmatmul.mubr.bf16.gmra.mrb[0].mxu0 %v151
  %v213 = vpop.f32.mrb[0].mxu0
  %v214 = vadd.f32 0.0, %v213
  %v215 = vpop.f32.mrb[0].mxu0
  %v216 = vpop.f32.mrb[0].mxu0
  %v217 = vadd.f32 0.0, %v216
  %v218 = vpop.f32.mrb[0].mxu0
  %219 = vmatprep.mubr.bf16.mxu0 0
  %220 = vmatmul.mubr.bf16.gmra.mrb[0].mxu0 %v154
  %v221 = vpop.f32.mrb[0].mxu0
  %v222 = vadd.f32 0.0, %v221
  %v223 = vpop.f32.mrb[0].mxu0
  %v224 = vpop.f32.mrb[0].mxu0
  %v225 = vadd.f32 0.0, %v224
  %v226 = vpop.f32.mrb[0].mxu0
  %227 = vmatprep.mubr.bf16.mxu0 0
  %228 = vmatmul.mubr.bf16.gmra.mrb[0].mxu0 %v157
  %v229 = vpop.f32.mrb[0].mxu0
  %v230 = vadd.f32 0.0, %v229
  %v231 = vpop.f32.mrb[0].mxu0
  %v232 = vpop.f32.mrb[0].mxu0
  %v233 = vadd.f32 0.0, %v232
  %v234 = vpop.f32.mrb[0].mxu0
  %235 = vmatprep.mubr.bf16.mxu0 0
  %236 = vmatmul.mubr.bf16.gmra.mrb[0].mxu0 %v160
  %v237 = vpop.f32.mrb[0].mxu0
  %v238 = vadd.f32 0.0, %v237
  %v239 = vpop.f32.mrb[0].mxu0
  %v240 = vpop.f32.mrb[0].mxu0
  %v241 = vadd.f32 0.0, %v240
  %v242 = vpop.f32.mrb[0].mxu0
  %243 = vmatprep.mubr.bf16.mxu0 0
  %244 = vmatmul.mubr.bf16.gmra.mrb[0].mxu0 %v163
  %v245 = vpop.f32.mrb[0].mxu0
  %v246 = vadd.f32 0.0, %v245
  %v247 = vpop.f32.mrb[0].mxu0
  %v248 = vpop.f32.mrb[0].mxu0
  %v249 = vadd.f32 0.0, %v248
  %v250 = vpop.f32.mrb[0].mxu0
  %251 = vmatprep.mubr.bf16.mxu0 0
  %252 = vmatmul.mubr.bf16.gmra.mrb[0].mxu0 %v166
  %v253 = vpop.f32.mrb[0].mxu0
  %v254 = vadd.f32 0.0, %v253
  %v255 = vpop.f32.mrb[0].mxu0
  %v256 = vpop.f32.mrb[0].mxu0
  %v257 = vadd.f32 0.0, %v256
  %v258 = vpop.f32.mrb[0].mxu0
  %259 = vmatprep.mubr.bf16.mxu0 0
  %260 = vmatmul.mubr.bf16.gmra.mrb[0].mxu0 %v169
  %v261 = vpop.f32.mrb[0].mxu0
  %v262 = vadd.f32 0.0, %v261
  %v263 = vpop.f32.mrb[0].mxu0
  %v264 = vpop.f32.mrb[0].mxu0
  %v265 = vadd.f32 0.0, %v264
  %v266 = vpop.f32.mrb[0].mxu0
  %267 = vdwg.mxu0
  %v268 = vpack.c.bf16 %v209, %v206
  %v269 = vpack.c.bf16 %v217, %v214
  %v270 = vpack.c.bf16 %v225, %v222
  %v271 = vpack.c.bf16 %v233, %v230
  %v272 = vpack.c.bf16 %v241, %v238
  %v273 = vpack.c.bf16 %v249, %v246
  %v274 = vpack.c.bf16 %v257, %v254
  %v275 = vpack.c.bf16 %v265, %v262
  %v284 = vunpack.c.l.b16 %v268
  %v285 = vunpack.c.h.b16 %v268
  %v286 = vunpack.c.l.b16 %v269
  %v287 = vunpack.c.h.b16 %v269
  %v288 = vunpack.c.l.b16 %v270
  %v289 = vunpack.c.h.b16 %v270
  %v290 = vunpack.c.l.b16 %v271
  %v291 = vunpack.c.h.b16 %v271
  %v292 = vunpack.c.l.b16 %v272
  %v293 = vunpack.c.h.b16 %v272
  %v294 = vunpack.c.l.b16 %v273
  %v295 = vunpack.c.h.b16 %v273
  %v296 = vunpack.c.l.b16 %v274
  %v297 = vunpack.c.h.b16 %v274
  %v298 = vunpack.c.l.b16 %v275
  %v299 = vunpack.c.h.b16 %v275
  %v300 = vpack.c.b16 %v284, %v284
  %v301 = vpack.c.b16 %v285, %v285
  %v302 = vpack.c.b16 %v286, %v286
  %v303 = vpack.c.b16 %v287, %v287
  %v304 = vpack.c.b16 %v288, %v288
  %v305 = vpack.c.b16 %v289, %v289
  %v306 = vpack.c.b16 %v290, %v290
  %v307 = vpack.c.b16 %v291, %v291
  %v308 = vpack.c.b16 %v292, %v292
  %v309 = vpack.c.b16 %v293, %v293
  %v310 = vpack.c.b16 %v294, %v294
  %v311 = vpack.c.b16 %v295, %v295
  %v312 = vpack.c.b16 %v296, %v296
  %v313 = vpack.c.b16 %v297, %v297
  %v314 = vpack.c.b16 %v298, %v298
  %v315 = vpack.c.b16 %v299, %v299
  %332 = vst [vmem:[%s46] sm:$0xf] %v300
  %333 = vst [vmem:[%s46 + $0x4] sm:$0xf] %v301
  %334 = vst [vmem:[%s46 + $0x8] sm:$0xf] %v302
  %335 = vst [vmem:[%s46 + $0xc] sm:$0xf] %v303
  %336 = vst [vmem:[%s46 + $0x10] sm:$0xf] %v304
  %337 = vst [vmem:[%s46 + $0x14] sm:$0xf] %v305
  %338 = vst [vmem:[%s46 + $0x18] sm:$0xf] %v306
  %339 = vst [vmem:[%s46 + $0x1c] sm:$0xf] %v307
  %340 = vst [vmem:[%s46 + $0x20] sm:$0xf] %v308
  %341 = vst [vmem:[%s46 + $0x24] sm:$0xf] %v309
  %342 = vst [vmem:[%s46 + $0x28] sm:$0xf] %v310
  %343 = vst [vmem:[%s46 + $0x2c] sm:$0xf] %v311
  %344 = vst [vmem:[%s46 + $0x30] sm:$0xf] %v312
  %345 = vst [vmem:[%s46 + $0x34] sm:$0xf] %v313
  %346 = vst [vmem:[%s46 + $0x38] sm:$0xf] %v314
  %347 = vst [vmem:[%s46 + $0x3c] sm:$0xf] %v315
  %v348 = vadd.f32 %v206, %v209
  %v349 = vadd.f32 %v348, %v214
  %v350 = vadd.f32 %v349, %v217
  %v351 = vadd.f32 %v350, %v222
  %v352 = vadd.f32 %v351, %v225
  %v353 = vadd.f32 %v352, %v230
  %v354 = vadd.f32 %v353, %v233
  %v355 = vadd.f32 %v354, %v238
  %v356 = vadd.f32 %v355, %v241
  %v357 = vadd.f32 %v356, %v246
  %v358 = vadd.f32 %v357, %v249
  %v359 = vadd.f32 %v358, %v254
  %v360 = vadd.f32 %v359, %v257
  %v361 = vadd.f32 %v360, %v262
  %v362 = vadd.f32 %v361, %v265
  %v363 = vrot.slane %v362, 4
  %v364 = vadd.f32 %v362, %v363
  %v365 = vrot.slane %v364, 2
  %v366 = vadd.f32 %v364, %v365
  %v367 = vrot.slane %v366, 1
  %v368 = vadd.f32 %v366, %v367
  %v369 = vmul.f32 %v206, %v206
  %v370 = vmul.f32 %v209, %v209
  %v371 = vmul.f32 %v214, %v214
  %v372 = vmul.f32 %v217, %v217
  %v373 = vmul.f32 %v222, %v222
  %v374 = vmul.f32 %v225, %v225
  %v375 = vmul.f32 %v230, %v230
  %v376 = vmul.f32 %v233, %v233
  %v377 = vmul.f32 %v238, %v238
  %v378 = vmul.f32 %v241, %v241
  %v379 = vmul.f32 %v246, %v246
  %v380 = vmul.f32 %v249, %v249
  %v381 = vmul.f32 %v254, %v254
  %v382 = vmul.f32 %v257, %v257
  %v383 = vmul.f32 %v262, %v262
  %v384 = vmul.f32 %v265, %v265
  %v385 = vadd.f32 %v369, %v370
  %v386 = vadd.f32 %v385, %v371
  %v387 = vadd.f32 %v386, %v372
  %v388 = vadd.f32 %v387, %v373
  %v389 = vadd.f32 %v388, %v374
  %v390 = vadd.f32 %v389, %v375
  %v391 = vadd.f32 %v390, %v376
  %v392 = vadd.f32 %v391, %v377
  %v393 = vadd.f32 %v392, %v378
  %v394 = vadd.f32 %v393, %v379
  %v395 = vadd.f32 %v394, %v380
  %v396 = vadd.f32 %v395, %v381
  %v397 = vadd.f32 %v396, %v382
  %v398 = vadd.f32 %v397, %v383
  %v399 = vadd.f32 %v398, %v384
  %v400 = vrot.slane %v399, 4
  %v401 = vadd.f32 %v399, %v400
  %v402 = vrot.slane %v401, 2
  %v403 = vadd.f32 %v401, %v402
  %v404 = vrot.slane %v403, 1
  %v405 = vadd.f32 %v403, %v404
  %vm406 = vcmask 1040384
  %v407 = vsel %vm406, %v368, %v405
  %vm408 = vcmask 1041408
  %v409 = vsel %vm408, %v407, 0.0
  %p410 = scmp.eq.s32.totalorder 0, 0
  // Predicated region
  $region10: #{res_block_forward.10} parent=0 // pred_check
    %p411 = pneg %p410
  $region11: #{res_block_forward.10} parent=0 // pred_check_branch
    %413 = sbr.rel (%p411) target = $region13
  $region12: #{res_block_forward.10} parent=0 // pred_region
    %414 = vst [vmem:[%s3] sm:$0xff] 0.0
  $region13: #{res_block_forward.10} parent=0 // pred_fallthru
    _
  %v415 = vld [vmem:[%s3] sm:$0xff]
  %v416 = vadd.f32 %v415, %v409
  %417 = vst [vmem:[%s3] sm:$0xff] %v416
  %s418 = sadd.s32 0, 0
  %s419 = smul.u32 16, %s418
  %p420 = scmp.lt.s32.totalorder %s419, 15
  %s421 = scalar_select %p420, %s419, 15
  %s422 = smul.addr %s421, 4
  %s423 = scalar_lea.vmem %s2, %s422
  // Predicated region
  $region14: #{res_block_forward.10} parent=0 // pred_check
    _
  $region15: #{res_block_forward.10} parent=0 // pred_check_branch
    %425 = sbr.rel (0) target = $region17
  $region16: #{res_block_forward.10} parent=0 // pred_region
    %s426 = sadd.s32 0, 0
    %s427 = smul.u32 16, %s426
  $region17: #{res_block_forward.10} parent=0 // pred_fallthru
    _
  // Predicated region
  $region18: #{res_block_forward.10} parent=0 // pred_check
    _
  $region19: #{res_block_forward.10} parent=0 // pred_check_branch
    %429 = sbr.rel (0) target = $region21
  $region20: #{res_block_forward.10} parent=0 // pred_region
    _
  $region21: #{res_block_forward.10} parent=0 // pred_fallthru
    _
  // Predicated region
  $region22: #{res_block_forward.10} parent=0 // pred_check
    _
  $region23: #{res_block_forward.10} parent=0 // pred_check_branch
    %431 = sbr.rel (0) target = $region25
  $region24: #{res_block_forward.10} parent=0 // pred_region
    %s432 = sadd.s32 0, 0
    %s433 = smul.u32 16, %s432
    %p434 = scmp.lt.s32.totalorder %s433, 15
    %s435 = scalar_select %p434, %s433, 15
    %s436 = smul.addr %s435, 4
    %s437 = scalar_lea.vmem %s2, %s436
  $region25: #{res_block_forward.10} parent=0 // pred_fallthru
    _
  // Predicated region
  $region26: #{res_block_forward.10} parent=0 // pred_check
    _
  $region27: #{res_block_forward.10} parent=0 // pred_check_branch
    %439 = sbr.rel (0) target = $region29
  $region28: #{res_block_forward.10} parent=0 // pred_region
    _
  $region29: #{res_block_forward.10} parent=0 // pred_fallthru
    _

// kernel: res_block_forward.9
$region0: #{res_block_forward.9}
  #allocation0 [shape = 'u32[]', space=smem, size = 0x4, offset = 0x4, fixed_abs, tag = 'smem constant byte address 0x4 - core index']
  #allocation1 [shape = 'u32[144,128]{1,0:T(1,128)}', space=vmem, size = 0x12000, scoped, tag = 'internal scratch']
  %s0 = inlined_call_operand.vmem [shape: bf16[128,128], index: 0, kind: input, shape index: {}]
  %s1 = inlined_call_operand.vmem [shape: f32[1,128], index: 1, kind: input, shape index: {}]
  %s2 = inlined_call_operand.vmem [shape: f32[1,128], index: 2, kind: input, shape index: {}]
  %s3 = inlined_call_operand.vmem [shape: bf16[128,128], index: 3, kind: output, shape index: {}]
  %s4 = sld [smem:[#allocation0]]
  $region22: #{res_block_forward.9} parent=0
    _
  %s6 = ssub.s32 1, %s4
  %s7 = scalar_select 0, %s6, %s4
  // Predicated region
  $region2: #{res_block_forward.9} parent=0 // pred_check
    _
  $region3: #{res_block_forward.9} parent=0 // pred_check_branch
    %9 = sbr.rel (0) target = $region5
  $region4: #{res_block_forward.9} parent=0 // pred_region
    _
  $region5: #{res_block_forward.9} parent=0 // pred_fallthru
    _
  // Predicated region
  $region6: #{res_block_forward.9} parent=0 // pred_check
    _
  $region7: #{res_block_forward.9} parent=0 // pred_check_branch
    %11 = sbr.rel (0) target = $region9
  $region8: #{res_block_forward.9} parent=0 // pred_region
    _
  $region9: #{res_block_forward.9} parent=0 // pred_fallthru
    _
  // Predicated region
  $region10: #{res_block_forward.9} parent=0 // pred_check
    _
  $region11: #{res_block_forward.9} parent=0 // pred_check_branch
    %13 = sbr.rel (0) target = $region13
  $region12: #{res_block_forward.9} parent=0 // pred_region
    _
  $region13: #{res_block_forward.9} parent=0 // pred_fallthru
    _
  %v14 = vld [vmem:[%s0] sm:$0xf]
  %v15 = vld [vmem:[%s0 + $0x4] sm:$0xf]
  %v16 = vld [vmem:[%s0 + $0x8] sm:$0xf]
  %v17 = vld [vmem:[%s0 + $0xc] sm:$0xf]
  %v18 = vld [vmem:[%s0 + $0x10] sm:$0xf]
  %v19 = vld [vmem:[%s0 + $0x14] sm:$0xf]
  %v20 = vld [vmem:[%s0 + $0x18] sm:$0xf]
  %v21 = vld [vmem:[%s0 + $0x1c] sm:$0xf]
  %v22 = vld [vmem:[%s0 + $0x20] sm:$0xf]
  %v23 = vld [vmem:[%s0 + $0x24] sm:$0xf]
  %v24 = vld [vmem:[%s0 + $0x28] sm:$0xf]
  %v25 = vld [vmem:[%s0 + $0x2c] sm:$0xf]
  %v26 = vld [vmem:[%s0 + $0x30] sm:$0xf]
  %v27 = vld [vmem:[%s0 + $0x34] sm:$0xf]
  %v28 = vld [vmem:[%s0 + $0x38] sm:$0xf]
  %v29 = vld [vmem:[%s0 + $0x3c] sm:$0xf]
  %v30 = vunpack.c.l.bf16 %v14
  %v31 = vunpack.c.l.bf16 %v15
  %v32 = vunpack.c.l.bf16 %v16
  %v33 = vunpack.c.l.bf16 %v17
  %v34 = vunpack.c.l.bf16 %v18
  %v35 = vunpack.c.l.bf16 %v19
  %v36 = vunpack.c.l.bf16 %v20
  %v37 = vunpack.c.l.bf16 %v21
  %v38 = vunpack.c.l.bf16 %v22
  %v39 = vunpack.c.l.bf16 %v23
  %v40 = vunpack.c.l.bf16 %v24
  %v41 = vunpack.c.l.bf16 %v25
  %v42 = vunpack.c.l.bf16 %v26
  %v43 = vunpack.c.l.bf16 %v27
  %v44 = vunpack.c.l.bf16 %v28
  %v45 = vunpack.c.l.bf16 %v29
  %v46 = vld [vmem:[%s1] sm:$0x1]
  %v48 = vlaneseq
  %v49 = vshrl.u32 %v48, 7
  %v50 = vsub.s32 0, %v49
  %v51 = vrot.slane %v46, %v50
  %v53 = vmul.f32 %v30, %v51
  %v54 = vmul.f32 %v31, %v51
  %v55 = vmul.f32 %v32, %v51
  %v56 = vmul.f32 %v33, %v51
  %v57 = vmul.f32 %v34, %v51
  %v58 = vmul.f32 %v35, %v51
  %v59 = vmul.f32 %v36, %v51
  %v60 = vmul.f32 %v37, %v51
  %v61 = vmul.f32 %v38, %v51
  %v62 = vmul.f32 %v39, %v51
  %v63 = vmul.f32 %v40, %v51
  %v64 = vmul.f32 %v41, %v51
  %v65 = vmul.f32 %v42, %v51
  %v66 = vmul.f32 %v43, %v51
  %v67 = vmul.f32 %v44, %v51
  %v68 = vmul.f32 %v45, %v51
  %v69 = vld [vmem:[%s2] sm:$0x1]
  %v71 = vlaneseq
  %v72 = vshrl.u32 %v71, 7
  %v73 = vsub.s32 0, %v72
  %v74 = vrot.slane %v69, %v73
  %v76 = vadd.f32 %v53, %v74
  %v77 = vadd.f32 %v54, %v74
  %v78 = vadd.f32 %v55, %v74
  %v79 = vadd.f32 %v56, %v74
  %v80 = vadd.f32 %v57, %v74
  %v81 = vadd.f32 %v58, %v74
  %v82 = vadd.f32 %v59, %v74
  %v83 = vadd.f32 %v60, %v74
  %v84 = vadd.f32 %v61, %v74
  %v85 = vadd.f32 %v62, %v74
  %v86 = vadd.f32 %v63, %v74
  %v87 = vadd.f32 %v64, %v74
  %v88 = vadd.f32 %v65, %v74
  %v89 = vadd.f32 %v66, %v74
  %v90 = vadd.f32 %v67, %v74
  %v91 = vadd.f32 %v68, %v74
  %v92 = vpack.c.bf16 %v77, %v76
  %v93 = vpack.c.bf16 %v79, %v78
  %v94 = vpack.c.bf16 %v81, %v80
  %v95 = vpack.c.bf16 %v83, %v82
  %v96 = vpack.c.bf16 %v85, %v84
  %v97 = vpack.c.bf16 %v87, %v86
  %v98 = vpack.c.bf16 %v89, %v88
  %v99 = vpack.c.bf16 %v91, %v90
  %v108 = vunpack.c.l.b16 %v92
  %v109 = vunpack.c.h.b16 %v92
  %v110 = vunpack.c.l.b16 %v93
  %v111 = vunpack.c.h.b16 %v93
  %v112 = vunpack.c.l.b16 %v94
  %v113 = vunpack.c.h.b16 %v94
  %v114 = vunpack.c.l.b16 %v95
  %v115 = vunpack.c.h.b16 %v95
  %v116 = vunpack.c.l.b16 %v96
  %v117 = vunpack.c.h.b16 %v96
  %v118 = vunpack.c.l.b16 %v97
  %v119 = vunpack.c.h.b16 %v97
  %v120 = vunpack.c.l.b16 %v98
  %v121 = vunpack.c.h.b16 %v98
  %v122 = vunpack.c.l.b16 %v99
  %v123 = vunpack.c.h.b16 %v99
  %v124 = vpack.c.b16 %v108, %v108
  %v125 = vpack.c.b16 %v109, %v109
  %v126 = vpack.c.b16 %v110, %v110
  %v127 = vpack.c.b16 %v111, %v111
  %v128 = vpack.c.b16 %v112, %v112
  %v129 = vpack.c.b16 %v113, %v113
  %v130 = vpack.c.b16 %v114, %v114
  %v131 = vpack.c.b16 %v115, %v115
  %v132 = vpack.c.b16 %v116, %v116
  %v133 = vpack.c.b16 %v117, %v117
  %v134 = vpack.c.b16 %v118, %v118
  %v135 = vpack.c.b16 %v119, %v119
  %v136 = vpack.c.b16 %v120, %v120
  %v137 = vpack.c.b16 %v121, %v121
  %v138 = vpack.c.b16 %v122, %v122
  %v139 = vpack.c.b16 %v123, %v123
  %156 = vst [vmem:[%s3] sm:$0xf] %v124
  %157 = vst [vmem:[%s3 + $0x4] sm:$0xf] %v125
  %158 = vst [vmem:[%s3 + $0x8] sm:$0xf] %v126
  %159 = vst [vmem:[%s3 + $0xc] sm:$0xf] %v127
  %160 = vst [vmem:[%s3 + $0x10] sm:$0xf] %v128
  %161 = vst [vmem:[%s3 + $0x14] sm:$0xf] %v129
  %162 = vst [vmem:[%s3 + $0x18] sm:$0xf] %v130
  %163 = vst [vmem:[%s3 + $0x1c] sm:$0xf] %v131
  %164 = vst [vmem:[%s3 + $0x20] sm:$0xf] %v132
  %165 = vst [vmem:[%s3 + $0x24] sm:$0xf] %v133
  %166 = vst [vmem:[%s3 + $0x28] sm:$0xf] %v134
  %167 = vst [vmem:[%s3 + $0x2c] sm:$0xf] %v135
  %168 = vst [vmem:[%s3 + $0x30] sm:$0xf] %v136
  %169 = vst [vmem:[%s3 + $0x34] sm:$0xf] %v137
  %170 = vst [vmem:[%s3 + $0x38] sm:$0xf] %v138
  %171 = vst [vmem:[%s3 + $0x3c] sm:$0xf] %v139
  // Predicated region
  $region14: #{res_block_forward.9} parent=0 // pred_check
    _
  $region15: #{res_block_forward.9} parent=0 // pred_check_branch
    %173 = sbr.rel (0) target = $region17
  $region16: #{res_block_forward.9} parent=0 // pred_region
    _
  $region17: #{res_block_forward.9} parent=0 // pred_fallthru
    _
  // Predicated region
  $region18: #{res_block_forward.9} parent=0 // pred_check
    _
  $region19: #{res_block_forward.9} parent=0 // pred_check_branch
    %175 = sbr.rel (0) target = $region21
  $region20: #{res_block_forward.9} parent=0 // pred_region
    _
  $region21: #{res_block_forward.9} parent=0 // pred_fallthru
    _

// kernel: res_block_forward.11
$region0: #{res_block_forward.11}
  #allocation0 [shape = 'u32[]', space=smem, size = 0x4, offset = 0x4, fixed_abs, tag = 'smem constant byte address 0x4 - core index']
  #allocation1 [shape = 'u32[144,128]{1,0:T(1,128)}', space=vmem, size = 0x12000, scoped, tag = 'internal scratch']
  %s0 = inlined_call_operand.vmem [shape: bf16[128,128], index: 0, kind: input, shape index: {}]
  %s1 = inlined_call_operand.vmem [shape: f32[1,128], index: 1, kind: input, shape index: {}]
  %s2 = inlined_call_operand.vmem [shape: f32[1,128], index: 2, kind: input, shape index: {}]
  %s3 = inlined_call_operand.vmem [shape: bf16[128,128], index: 3, kind: input, shape index: {}]
  %s4 = inlined_call_operand.vmem [shape: f32[128,128], index: 4, kind: output, shape index: {}]
  %s5 = sld [smem:[#allocation0]]
  $region26: #{res_block_forward.11} parent=0
    _
  %s7 = ssub.s32 1, %s5
  %s8 = scalar_select 0, %s7, %s5
  // Predicated region
  $region2: #{res_block_forward.11} parent=0 // pred_check
    _
  $region3: #{res_block_forward.11} parent=0 // pred_check_branch
    %10 = sbr.rel (0) target = $region5
  $region4: #{res_block_forward.11} parent=0 // pred_region
    _
  $region5: #{res_block_forward.11} parent=0 // pred_fallthru
    _
  // Predicated region
  $region6: #{res_block_forward.11} parent=0 // pred_check
    _
  $region7: #{res_block_forward.11} parent=0 // pred_check_branch
    %12 = sbr.rel (0) target = $region9
  $region8: #{res_block_forward.11} parent=0 // pred_region
    _
  $region9: #{res_block_forward.11} parent=0 // pred_fallthru
    _
  // Predicated region
  $region10: #{res_block_forward.11} parent=0 // pred_check
    _
  $region11: #{res_block_forward.11} parent=0 // pred_check_branch
    %14 = sbr.rel (0) target = $region13
  $region12: #{res_block_forward.11} parent=0 // pred_region
    _
  $region13: #{res_block_forward.11} parent=0 // pred_fallthru
    _
  // Predicated region
  $region14: #{res_block_forward.11} parent=0 // pred_check
    _
  $region15: #{res_block_forward.11} parent=0 // pred_check_branch
    %16 = sbr.rel (0) target = $region17
  $region16: #{res_block_forward.11} parent=0 // pred_region
    _
  $region17: #{res_block_forward.11} parent=0 // pred_fallthru
    _
  %v17 = vld [vmem:[%s0] sm:$0xf]
  %v18 = vld [vmem:[%s0 + $0x4] sm:$0xf]
  %v19 = vld [vmem:[%s0 + $0x8] sm:$0xf]
  %v20 = vld [vmem:[%s0 + $0xc] sm:$0xf]
  %v21 = vld [vmem:[%s0 + $0x10] sm:$0xf]
  %v22 = vld [vmem:[%s0 + $0x14] sm:$0xf]
  %v23 = vld [vmem:[%s0 + $0x18] sm:$0xf]
  %v24 = vld [vmem:[%s0 + $0x1c] sm:$0xf]
  %v25 = vld [vmem:[%s0 + $0x20] sm:$0xf]
  %v26 = vld [vmem:[%s0 + $0x24] sm:$0xf]
  %v27 = vld [vmem:[%s0 + $0x28] sm:$0xf]
  %v28 = vld [vmem:[%s0 + $0x2c] sm:$0xf]
  %v29 = vld [vmem:[%s0 + $0x30] sm:$0xf]
  %v30 = vld [vmem:[%s0 + $0x34] sm:$0xf]
  %v31 = vld [vmem:[%s0 + $0x38] sm:$0xf]
  %v32 = vld [vmem:[%s0 + $0x3c] sm:$0xf]
  %v33 = vunpack.c.l.bf16 %v17
  %v34 = vunpack.c.l.bf16 %v18
  %v35 = vunpack.c.l.bf16 %v19
  %v36 = vunpack.c.l.bf16 %v20
  %v37 = vunpack.c.l.bf16 %v21
  %v38 = vunpack.c.l.bf16 %v22
  %v39 = vunpack.c.l.bf16 %v23
  %v40 = vunpack.c.l.bf16 %v24
  %v41 = vunpack.c.l.bf16 %v25
  %v42 = vunpack.c.l.bf16 %v26
  %v43 = vunpack.c.l.bf16 %v27
  %v44 = vunpack.c.l.bf16 %v28
  %v45 = vunpack.c.l.bf16 %v29
  %v46 = vunpack.c.l.bf16 %v30
  %v47 = vunpack.c.l.bf16 %v31
  %v48 = vunpack.c.l.bf16 %v32
  %v49 = vld [vmem:[%s1] sm:$0x1]
  %v51 = vlaneseq
  %v52 = vshrl.u32 %v51, 7
  %v53 = vsub.s32 0, %v52
  %v54 = vrot.slane %v49, %v53
  %v56 = vmul.f32 %v33, %v54
  %v57 = vmul.f32 %v34, %v54
  %v58 = vmul.f32 %v35, %v54
  %v59 = vmul.f32 %v36, %v54
  %v60 = vmul.f32 %v37, %v54
  %v61 = vmul.f32 %v38, %v54
  %v62 = vmul.f32 %v39, %v54
  %v63 = vmul.f32 %v40, %v54
  %v64 = vmul.f32 %v41, %v54
  %v65 = vmul.f32 %v42, %v54
  %v66 = vmul.f32 %v43, %v54
  %v67 = vmul.f32 %v44, %v54
  %v68 = vmul.f32 %v45, %v54
  %v69 = vmul.f32 %v46, %v54
  %v70 = vmul.f32 %v47, %v54
  %v71 = vmul.f32 %v48, %v54
  %v72 = vld [vmem:[%s2] sm:$0x1]
  %v74 = vlaneseq
  %v75 = vshrl.u32 %v74, 7
  %v76 = vsub.s32 0, %v75
  %v77 = vrot.slane %v72, %v76
  %v79 = vadd.f32 %v56, %v77
  %v80 = vadd.f32 %v57, %v77
  %v81 = vadd.f32 %v58, %v77
  %v82 = vadd.f32 %v59, %v77
  %v83 = vadd.f32 %v60, %v77
  %v84 = vadd.f32 %v61, %v77
  %v85 = vadd.f32 %v62, %v77
  %v86 = vadd.f32 %v63, %v77
  %v87 = vadd.f32 %v64, %v77
  %v88 = vadd.f32 %v65, %v77
  %v89 = vadd.f32 %v66, %v77
  %v90 = vadd.f32 %v67, %v77
  %v91 = vadd.f32 %v68, %v77
  %v92 = vadd.f32 %v69, %v77
  %v93 = vadd.f32 %v70, %v77
  %v94 = vadd.f32 %v71, %v77
  %vm95 = vcmp.gt.f32.partialorder %v79, 0.0
  %vm96 = vcmp.gt.f32.partialorder %v80, 0.0
  %vm97 = vcmp.gt.f32.partialorder %v81, 0.0
  %vm98 = vcmp.gt.f32.partialorder %v82, 0.0
  %vm99 = vcmp.gt.f32.partialorder %v83, 0.0
  %vm100 = vcmp.gt.f32.partialorder %v84, 0.0
  %vm101 = vcmp.gt.f32.partialorder %v85, 0.0
  %vm102 = vcmp.gt.f32.partialorder %v86, 0.0
  %vm103 = vcmp.gt.f32.partialorder %v87, 0.0
  %vm104 = vcmp.gt.f32.partialorder %v88, 0.0
  %vm105 = vcmp.gt.f32.partialorder %v89, 0.0
  %vm106 = vcmp.gt.f32.partialorder %v90, 0.0
  %vm107 = vcmp.gt.f32.partialorder %v91, 0.0
  %vm108 = vcmp.gt.f32.partialorder %v92, 0.0
  %vm109 = vcmp.gt.f32.partialorder %v93, 0.0
  %vm110 = vcmp.gt.f32.partialorder %v94, 0.0
  %v111 = vmul.f32 %v79, 0.01
  %v112 = vmul.f32 %v80, 0.01
  %v113 = vmul.f32 %v81, 0.01
  %v114 = vmul.f32 %v82, 0.01
  %v115 = vmul.f32 %v83, 0.01
  %v116 = vmul.f32 %v84, 0.01
  %v117 = vmul.f32 %v85, 0.01
  %v118 = vmul.f32 %v86, 0.01
  %v119 = vmul.f32 %v87, 0.01
  %v120 = vmul.f32 %v88, 0.01
  %v121 = vmul.f32 %v89, 0.01
  %v122 = vmul.f32 %v90, 0.01
  %v123 = vmul.f32 %v91, 0.01
  %v124 = vmul.f32 %v92, 0.01
  %v125 = vmul.f32 %v93, 0.01
  %v126 = vmul.f32 %v94, 0.01
  %v127 = vsel %vm95, %v79, %v111
  %v128 = vsel %vm96, %v80, %v112
  %v129 = vsel %vm97, %v81, %v113
  %v130 = vsel %vm98, %v82, %v114
  %v131 = vsel %vm99, %v83, %v115
  %v132 = vsel %vm100, %v84, %v116
  %v133 = vsel %vm101, %v85, %v117
  %v134 = vsel %vm102, %v86, %v118
  %v135 = vsel %vm103, %v87, %v119
  %v136 = vsel %vm104, %v88, %v120
  %v137 = vsel %vm105, %v89, %v121
  %v138 = vsel %vm106, %v90, %v122
  %v139 = vsel %vm107, %v91, %v123
  %v140 = vsel %vm108, %v92, %v124
  %v141 = vsel %vm109, %v93, %v125
  %v142 = vsel %vm110, %v94, %v126
  %v143 = vld [vmem:[%s3] sm:$0xf]
  %v144 = vld [vmem:[%s3 + $0x4] sm:$0xf]
  %v145 = vld [vmem:[%s3 + $0x8] sm:$0xf]
  %v146 = vld [vmem:[%s3 + $0xc] sm:$0xf]
  %v147 = vld [vmem:[%s3 + $0x10] sm:$0xf]
  %v148 = vld [vmem:[%s3 + $0x14] sm:$0xf]
  %v149 = vld [vmem:[%s3 + $0x18] sm:$0xf]
  %v150 = vld [vmem:[%s3 + $0x1c] sm:$0xf]
  %v151 = vld [vmem:[%s3 + $0x20] sm:$0xf]
  %v152 = vld [vmem:[%s3 + $0x24] sm:$0xf]
  %v153 = vld [vmem:[%s3 + $0x28] sm:$0xf]
  %v154 = vld [vmem:[%s3 + $0x2c] sm:$0xf]
  %v155 = vld [vmem:[%s3 + $0x30] sm:$0xf]
  %v156 = vld [vmem:[%s3 + $0x34] sm:$0xf]
  %v157 = vld [vmem:[%s3 + $0x38] sm:$0xf]
  %v158 = vld [vmem:[%s3 + $0x3c] sm:$0xf]
  %v159 = vunpack.c.l.bf16 %v143
  %v160 = vunpack.c.l.bf16 %v144
  %v161 = vunpack.c.l.bf16 %v145
  %v162 = vunpack.c.l.bf16 %v146
  %v163 = vunpack.c.l.bf16 %v147
  %v164 = vunpack.c.l.bf16 %v148
  %v165 = vunpack.c.l.bf16 %v149
  %v166 = vunpack.c.l.bf16 %v150
  %v167 = vunpack.c.l.bf16 %v151
  %v168 = vunpack.c.l.bf16 %v152
  %v169 = vunpack.c.l.bf16 %v153
  %v170 = vunpack.c.l.bf16 %v154
  %v171 = vunpack.c.l.bf16 %v155
  %v172 = vunpack.c.l.bf16 %v156
  %v173 = vunpack.c.l.bf16 %v157
  %v174 = vunpack.c.l.bf16 %v158
  %v175 = vadd.f32 %v127, %v159
  %v176 = vadd.f32 %v128, %v160
  %v177 = vadd.f32 %v129, %v161
  %v178 = vadd.f32 %v130, %v162
  %v179 = vadd.f32 %v131, %v163
  %v180 = vadd.f32 %v132, %v164
  %v181 = vadd.f32 %v133, %v165
  %v182 = vadd.f32 %v134, %v166
  %v183 = vadd.f32 %v135, %v167
  %v184 = vadd.f32 %v136, %v168
  %v185 = vadd.f32 %v137, %v169
  %v186 = vadd.f32 %v138, %v170
  %v187 = vadd.f32 %v139, %v171
  %v188 = vadd.f32 %v140, %v172
  %v189 = vadd.f32 %v141, %v173
  %v190 = vadd.f32 %v142, %v174
  %vm191 = vcmp.gt.f32.partialorder %v175, 0.0
  %vm192 = vcmp.gt.f32.partialorder %v176, 0.0
  %vm193 = vcmp.gt.f32.partialorder %v177, 0.0
  %vm194 = vcmp.gt.f32.partialorder %v178, 0.0
  %vm195 = vcmp.gt.f32.partialorder %v179, 0.0
  %vm196 = vcmp.gt.f32.partialorder %v180, 0.0
  %vm197 = vcmp.gt.f32.partialorder %v181, 0.0
  %vm198 = vcmp.gt.f32.partialorder %v182, 0.0
  %vm199 = vcmp.gt.f32.partialorder %v183, 0.0
  %vm200 = vcmp.gt.f32.partialorder %v184, 0.0
  %vm201 = vcmp.gt.f32.partialorder %v185, 0.0
  %vm202 = vcmp.gt.f32.partialorder %v186, 0.0
  %vm203 = vcmp.gt.f32.partialorder %v187, 0.0
  %vm204 = vcmp.gt.f32.partialorder %v188, 0.0
  %vm205 = vcmp.gt.f32.partialorder %v189, 0.0
  %vm206 = vcmp.gt.f32.partialorder %v190, 0.0
  %v207 = vmul.f32 %v175, 0.01
  %v208 = vmul.f32 %v176, 0.01
  %v209 = vmul.f32 %v177, 0.01
  %v210 = vmul.f32 %v178, 0.01
  %v211 = vmul.f32 %v179, 0.01
  %v212 = vmul.f32 %v180, 0.01
  %v213 = vmul.f32 %v181, 0.01
  %v214 = vmul.f32 %v182, 0.01
  %v215 = vmul.f32 %v183, 0.01
  %v216 = vmul.f32 %v184, 0.01
  %v217 = vmul.f32 %v185, 0.01
  %v218 = vmul.f32 %v186, 0.01
  %v219 = vmul.f32 %v187, 0.01
  %v220 = vmul.f32 %v188, 0.01
  %v221 = vmul.f32 %v189, 0.01
  %v222 = vmul.f32 %v190, 0.01
  %v223 = vsel %vm191, %v175, %v207
  %v224 = vsel %vm192, %v176, %v208
  %v225 = vsel %vm193, %v177, %v209
  %v226 = vsel %vm194, %v178, %v210
  %v227 = vsel %vm195, %v179, %v211
  %v228 = vsel %vm196, %v180, %v212
  %v229 = vsel %vm197, %v181, %v213
  %v230 = vsel %vm198, %v182, %v214
  %v231 = vsel %vm199, %v183, %v215
  %v232 = vsel %vm200, %v184, %v216
  %v233 = vsel %vm201, %v185, %v217
  %v234 = vsel %vm202, %v186, %v218
  %v235 = vsel %vm203, %v187, %v219
  %v236 = vsel %vm204, %v188, %v220
  %v237 = vsel %vm205, %v189, %v221
  %v238 = vsel %vm206, %v190, %v222
  %239 = vst [vmem:[%s4] sm:$0xff] %v223
  %240 = vst [vmem:[%s4 + $0x8] sm:$0xff] %v224
  %241 = vst [vmem:[%s4 + $0x10] sm:$0xff] %v225
  %242 = vst [vmem:[%s4 + $0x18] sm:$0xff] %v226
  %243 = vst [vmem:[%s4 + $0x20] sm:$0xff] %v227
  %244 = vst [vmem:[%s4 + $0x28] sm:$0xff] %v228
  %245 = vst [vmem:[%s4 + $0x30] sm:$0xff] %v229
  %246 = vst [vmem:[%s4 + $0x38] sm:$0xff] %v230
  %247 = vst [vmem:[%s4 + $0x40] sm:$0xff] %v231
  %248 = vst [vmem:[%s4 + $0x48] sm:$0xff] %v232
  %249 = vst [vmem:[%s4 + $0x50] sm:$0xff] %v233
  %250 = vst [vmem:[%s4 + $0x58] sm:$0xff] %v234
  %251 = vst [vmem:[%s4 + $0x60] sm:$0xff] %v235
  %252 = vst [vmem:[%s4 + $0x68] sm:$0xff] %v236
  %253 = vst [vmem:[%s4 + $0x70] sm:$0xff] %v237
  %254 = vst [vmem:[%s4 + $0x78] sm:$0xff] %v238
  // Predicated region
  $region18: #{res_block_forward.11} parent=0 // pred_check
    _
  $region19: #{res_block_forward.11} parent=0 // pred_check_branch
    %256 = sbr.rel (0) target = $region21
  $region20: #{res_block_forward.11} parent=0 // pred_region
    _
  $region21: #{res_block_forward.11} parent=0 // pred_fallthru
    _
  // Predicated region
  $region22: #{res_block_forward.11} parent=0 // pred_check
    _
  $region23: #{res_block_forward.11} parent=0 // pred_check_branch
    %258 = sbr.rel (0) target = $region25
  $region24: #{res_block_forward.11} parent=0 // pred_region
    _
  $region25: #{res_block_forward.11} parent=0 // pred_fallthru
    _

// kernel: res_block_forward.8
$region0: #{res_block_forward.8}
  #allocation0 [shape = 'u32[]', space=smem, size = 0x4, offset = 0x4, fixed_abs, tag = 'smem constant byte address 0x4 - core index']
  #allocation1 [shape = 'u32[144,128]{1,0:T(1,128)}', space=vmem, size = 0x12000, scoped, tag = 'internal scratch']
  %s0 = inlined_call_operand.vmem [shape: bf16[128,16], index: 0, kind: input, shape index: {}]
  %s1 = inlined_call_operand.vmem [shape: bf16[16,128], index: 1, kind: input, shape index: {}]
  %s2 = inlined_call_operand.vmem [shape: bf16[128,128], index: 2, kind: output, shape index: {0}]
  %s3 = inlined_call_operand.vmem [shape: f32[8,128], index: 3, kind: output, shape index: {1}]
  %4 = xla_tuple %s2, %s3
  %s5 = sld [smem:[#allocation0]]
  $region30: #{res_block_forward.8} parent=0
    _
  %s7 = ssub.s32 1, %s5
  %s8 = scalar_select 0, %s7, %s5
  // Predicated region
  $region2: #{res_block_forward.8} parent=0 // pred_check
    _
  $region3: #{res_block_forward.8} parent=0 // pred_check_branch
    %10 = sbr.rel (0) target = $region5
  $region4: #{res_block_forward.8} parent=0 // pred_region
    %s11 = sadd.s32 0, 0
    %s12 = smul.u32 16, %s11
    %p13 = scmp.lt.s32.totalorder %s12, 15
    %s14 = scalar_select %p13, %s12, 15
    %s15 = smul.addr %s14, 4
    %s16 = scalar_lea.vmem %s0, %s15
    %s17 = sadd.s32 0, 0
    %s18 = smul.u32 16, %s17
  $region5: #{res_block_forward.8} parent=0 // pred_fallthru
    _
  // Predicated region
  $region6: #{res_block_forward.8} parent=0 // pred_check
    _
  $region7: #{res_block_forward.8} parent=0 // pred_check_branch
    %20 = sbr.rel (0) target = $region9
  $region8: #{res_block_forward.8} parent=0 // pred_region
    _
  $region9: #{res_block_forward.8} parent=0 // pred_fallthru
    _
  %s21 = sadd.s32 0, 0
  %s22 = smul.u32 16, %s21
  %p23 = scmp.lt.s32.totalorder %s22, 15
  %s24 = scalar_select %p23, %s22, 15
  %s25 = smul.addr %s24, 4
  %s26 = scalar_lea.vmem %s0, %s25
  %s27 = sadd.s32 0, 0
  %s28 = smul.u32 16, %s27
  %p29 = scmp.lt.s32.totalorder %s28, 15
  %s30 = scalar_select %p29, %s28, 15
  %s31 = smul.addr %s30, 4
  %s32 = scalar_lea.vmem %s2, %s31
  %s33 = sadd.s32 0, 0
  %s34 = smul.u32 16, %s33
  %p35 = scmp.lt.s32.totalorder %s34, 15
  %s36 = scalar_select %p35, %s34, 15
  %s37 = smul.addr %s36, 4
  %s38 = scalar_lea.vmem %s0, %s37
  %s39 = sadd.s32 0, 0
  %s40 = smul.u32 16, %s39
  %s41 = sadd.s32 0, 0
  %s42 = smul.u32 16, %s41
  %p43 = scmp.lt.s32.totalorder %s42, 15
  %s44 = scalar_select %p43, %s42, 15
  %s45 = smul.addr %s44, 4
  %s46 = scalar_lea.vmem %s2, %s45
  %s47 = sadd.s32 0, 0
  %s48 = smul.u32 16, %s47
  %v50 = vld [vmem:[%s38] sm:$0xf]
  %v51 = vld [vmem:[%s38 + $0x4] sm:$0xf]
  %v52 = vld [vmem:[%s38 + $0x8] sm:$0xf]
  %v53 = vld [vmem:[%s38 + $0xc] sm:$0xf]
  %v54 = vld [vmem:[%s38 + $0x10] sm:$0xf]
  %v55 = vld [vmem:[%s38 + $0x14] sm:$0xf]
  %v56 = vld [vmem:[%s38 + $0x18] sm:$0xf]
  %v57 = vld [vmem:[%s38 + $0x1c] sm:$0xf]
  %v58 = vld [vmem:[%s38 + $0x20] sm:$0xf]
  %v59 = vld [vmem:[%s38 + $0x24] sm:$0xf]
  %v60 = vld [vmem:[%s38 + $0x28] sm:$0xf]
  %v61 = vld [vmem:[%s38 + $0x2c] sm:$0xf]
  %v62 = vld [vmem:[%s38 + $0x30] sm:$0xf]
  %v63 = vld [vmem:[%s38 + $0x34] sm:$0xf]
  %v64 = vld [vmem:[%s38 + $0x38] sm:$0xf]
  %v65 = vld [vmem:[%s38 + $0x3c] sm:$0xf]
  %v66 = vld [vmem:[%s1] sm:$0xf]
  %v67 = vld [vmem:[%s1 + $0x4] sm:$0xf]
  %v84 = vunpack.c.l.b16 %v50
  %v85 = vunpack.c.l.b16 %v51
  %v86 = vunpack.c.l.b16 %v52
  %v87 = vunpack.c.l.b16 %v53
  %v88 = vunpack.c.l.b16 %v54
  %v89 = vunpack.c.l.b16 %v55
  %v90 = vunpack.c.l.b16 %v56
  %v91 = vunpack.c.l.b16 %v57
  %v92 = vunpack.c.l.b16 %v58
  %v93 = vunpack.c.l.b16 %v59
  %v94 = vunpack.c.l.b16 %v60
  %v95 = vunpack.c.l.b16 %v61
  %v96 = vunpack.c.l.b16 %v62
  %v97 = vunpack.c.l.b16 %v63
  %v98 = vunpack.c.l.b16 %v64
  %v99 = vunpack.c.l.b16 %v65
  %v100 = vpack.c.b16 %v85, %v84
  %v101 = vpack.c.b16 %v87, %v86
  %v102 = vpack.c.b16 %v89, %v88
  %v103 = vpack.c.b16 %v91, %v90
  %v104 = vpack.c.b16 %v93, %v92
  %v105 = vpack.c.b16 %v95, %v94
  %v106 = vpack.c.b16 %v97, %v96
  %v107 = vpack.c.b16 %v99, %v98
  %v110 = vunpack.c.l.b16 %v66
  %v111 = vunpack.c.l.b16 %v67
  %v112 = vpack.c.b16 %v111, %v110
  %vm114 = vcmask 130048
  %v116 = vsel %vm114, %v100, 0
  %v119 = vsel %vm114, %v101, 0
  %v122 = vsel %vm114, %v102, 0
  %v125 = vsel %vm114, %v103, 0
  %v128 = vsel %vm114, %v104, 0
  %v131 = vsel %vm114, %v105, 0
  %v134 = vsel %vm114, %v106, 0
  %v137 = vsel %vm114, %v107, 0
  %139 = vmatprep.subr.bf16.mxu0 0
  %140 = vmatpush1.bf16.msra.mxu0 %v112
  %141 = vmatprep.subr.bf16.mxu0 0
  %142 = vmatpush1.bf16.msra.mxu0 0
  %143 = vmatprep.subr.bf16.mxu0 0
  %144 = vmatpush1.bf16.msra.mxu0 0
  %145 = vmatprep.subr.bf16.mxu0 0
  %146 = vmatpush1.bf16.msra.mxu0 0
  %147 = vmatprep.subr.bf16.mxu0 0
  %148 = vmatpush1.bf16.msra.mxu0 0
  %149 = vmatprep.subr.bf16.mxu0 0
  %150 = vmatpush1.bf16.msra.mxu0 0
  %151 = vmatprep.subr.bf16.mxu0 0
  %152 = vmatpush1.bf16.msra.mxu0 0
  %153 = vmatprep.subr.bf16.mxu0 0
  %154 = vmatpush1.bf16.msra.mxu0 0
  %155 = vmatprep.subr.bf16.mxu0 0
  %156 = vmatpush1.bf16.msra.mxu0 0
  %157 = vmatprep.subr.bf16.mxu0 0
  %158 = vmatpush1.bf16.msra.mxu0 0
  %159 = vmatprep.subr.bf16.mxu0 0
  %160 = vmatpush1.bf16.msra.mxu0 0
  %161 = vmatprep.subr.bf16.mxu0 0
  %162 = vmatpush1.bf16.msra.mxu0 0
  %163 = vmatprep.subr.bf16.mxu0 0
  %164 = vmatpush1.bf16.msra.mxu0 0
  %165 = vmatprep.subr.bf16.mxu0 0
  %166 = vmatpush1.bf16.msra.mxu0 0
  %167 = vmatprep.subr.bf16.mxu0 0
  %168 = vmatpush1.bf16.msra.mxu0 0
  %169 = vmatprep.subr.bf16.mxu0 0
  %170 = vmatpush1.bf16.msra.mxu0 0
  %171 = vmatprep.mubr.bf16.mxu0 0
  %172 = vmatmul.mubr.bf16.gmra.mrb[0].mxu0 %v116
  %v173 = vpop.f32.mrb[0].mxu0
  %v174 = vadd.f32 0.0, %v173
  %v175 = vpop.f32.mrb[0].mxu0
  %v176 = vpop.f32.mrb[0].mxu0
  %v177 = vadd.f32 0.0, %v176
  %v178 = vpop.f32.mrb[0].mxu0
  %179 = vmatprep.mubr.bf16.mxu0 0
  %180 = vmatmul.mubr.bf16.gmra.mrb[0].mxu0 %v119
  %v181 = vpop.f32.mrb[0].mxu0
  %v182 = vadd.f32 0.0, %v181
  %v183 = vpop.f32.mrb[0].mxu0
  %v184 = vpop.f32.mrb[0].mxu0
  %v185 = vadd.f32 0.0, %v184
  %v186 = vpop.f32.mrb[0].mxu0
  %187 = vmatprep.mubr.bf16.mxu0 0
  %188 = vmatmul.mubr.bf16.gmra.mrb[0].mxu0 %v122
  %v189 = vpop.f32.mrb[0].mxu0
  %v190 = vadd.f32 0.0, %v189
  %v191 = vpop.f32.mrb[0].mxu0
  %v192 = vpop.f32.mrb[0].mxu0
  %v193 = vadd.f32 0.0, %v192
  %v194 = vpop.f32.mrb[0].mxu0
  %195 = vmatprep.mubr.bf16.mxu0 0
  %196 = vmatmul.mubr.bf16.gmra.mrb[0].mxu0 %v125
  %v197 = vpop.f32.mrb[0].mxu0
  %v198 = vadd.f32 0.0, %v197
  %v199 = vpop.f32.mrb[0].mxu0
  %v200 = vpop.f32.mrb[0].mxu0
  %v201 = vadd.f32 0.0, %v200
  %v202 = vpop.f32.mrb[0].mxu0
  %203 = vmatprep.mubr.bf16.mxu0 0
  %204 = vmatmul.mubr.bf16.gmra.mrb[0].mxu0 %v128
  %v205 = vpop.f32.mrb[0].mxu0
  %v206 = vadd.f32 0.0, %v205
  %v207 = vpop.f32.mrb[0].mxu0
  %v208 = vpop.f32.mrb[0].mxu0
  %v209 = vadd.f32 0.0, %v208
  %v210 = vpop.f32.mrb[0].mxu0
  %211 = vmatprep.mubr.bf16.mxu0 0
  %212 = vmatmul.mubr.bf16.gmra.mrb[0].mxu0 %v131
  %v213 = vpop.f32.mrb[0].mxu0
  %v214 = vadd.f32 0.0, %v213
  %v215 = vpop.f32.mrb[0].mxu0
  %v216 = vpop.f32.mrb[0].mxu0
  %v217 = vadd.f32 0.0, %v216
  %v218 = vpop.f32.mrb[0].mxu0
  %219 = vmatprep.mubr.bf16.mxu0 0
  %220 = vmatmul.mubr.bf16.gmra.mrb[0].mxu0 %v134
  %v221 = vpop.f32.mrb[0].mxu0
  %v222 = vadd.f32 0.0, %v221
  %v223 = vpop.f32.mrb[0].mxu0
  %v224 = vpop.f32.mrb[0].mxu0
  %v225 = vadd.f32 0.0, %v224
  %v226 = vpop.f32.mrb[0].mxu0
  %227 = vmatprep.mubr.bf16.mxu0 0
  %228 = vmatmul.mubr.bf16.gmra.mrb[0].mxu0 %v137
  %v229 = vpop.f32.mrb[0].mxu0
  %v230 = vadd.f32 0.0, %v229
  %v231 = vpop.f32.mrb[0].mxu0
  %v232 = vpop.f32.mrb[0].mxu0
  %v233 = vadd.f32 0.0, %v232
  %v234 = vpop.f32.mrb[0].mxu0
  %235 = vdwg.mxu0
  %v236 = vpack.c.bf16 %v177, %v174
  %v237 = vpack.c.bf16 %v185, %v182
  %v238 = vpack.c.bf16 %v193, %v190
  %v239 = vpack.c.bf16 %v201, %v198
  %v240 = vpack.c.bf16 %v209, %v206
  %v241 = vpack.c.bf16 %v217, %v214
  %v242 = vpack.c.bf16 %v225, %v222
  %v243 = vpack.c.bf16 %v233, %v230
  %v252 = vunpack.c.l.b16 %v236
  %v253 = vunpack.c.h.b16 %v236
  %v254 = vunpack.c.l.b16 %v237
  %v255 = vunpack.c.h.b16 %v237
  %v256 = vunpack.c.l.b16 %v238
  %v257 = vunpack.c.h.b16 %v238
  %v258 = vunpack.c.l.b16 %v239
  %v259 = vunpack.c.h.b16 %v239
  %v260 = vunpack.c.l.b16 %v240
  %v261 = vunpack.c.h.b16 %v240
  %v262 = vunpack.c.l.b16 %v241
  %v263 = vunpack.c.h.b16 %v241
  %v264 = vunpack.c.l.b16 %v242
  %v265 = vunpack.c.h.b16 %v242
  %v266 = vunpack.c.l.b16 %v243
  %v267 = vunpack.c.h.b16 %v243
  %v268 = vpack.c.b16 %v252, %v252
  %v269 = vpack.c.b16 %v253, %v253
  %v270 = vpack.c.b16 %v254, %v254
  %v271 = vpack.c.b16 %v255, %v255
  %v272 = vpack.c.b16 %v256, %v256
  %v273 = vpack.c.b16 %v257, %v257
  %v274 = vpack.c.b16 %v258, %v258
  %v275 = vpack.c.b16 %v259, %v259
  %v276 = vpack.c.b16 %v260, %v260
  %v277 = vpack.c.b16 %v261, %v261
  %v278 = vpack.c.b16 %v262, %v262
  %v279 = vpack.c.b16 %v263, %v263
  %v280 = vpack.c.b16 %v264, %v264
  %v281 = vpack.c.b16 %v265, %v265
  %v282 = vpack.c.b16 %v266, %v266
  %v283 = vpack.c.b16 %v267, %v267
  %300 = vst [vmem:[%s46] sm:$0xf] %v268
  %301 = vst [vmem:[%s46 + $0x4] sm:$0xf] %v269
  %302 = vst [vmem:[%s46 + $0x8] sm:$0xf] %v270
  %303 = vst [vmem:[%s46 + $0xc] sm:$0xf] %v271
  %304 = vst [vmem:[%s46 + $0x10] sm:$0xf] %v272
  %305 = vst [vmem:[%s46 + $0x14] sm:$0xf] %v273
  %306 = vst [vmem:[%s46 + $0x18] sm:$0xf] %v274
  %307 = vst [vmem:[%s46 + $0x1c] sm:$0xf] %v275
  %308 = vst [vmem:[%s46 + $0x20] sm:$0xf] %v276
  %309 = vst [vmem:[%s46 + $0x24] sm:$0xf] %v277
  %310 = vst [vmem:[%s46 + $0x28] sm:$0xf] %v278
  %311 = vst [vmem:[%s46 + $0x2c] sm:$0xf] %v279
  %312 = vst [vmem:[%s46 + $0x30] sm:$0xf] %v280
  %313 = vst [vmem:[%s46 + $0x34] sm:$0xf] %v281
  %314 = vst [vmem:[%s46 + $0x38] sm:$0xf] %v282
  %315 = vst [vmem:[%s46 + $0x3c] sm:$0xf] %v283
  %v316 = vadd.f32 %v174, %v177
  %v317 = vadd.f32 %v316, %v182
  %v318 = vadd.f32 %v317, %v185
  %v319 = vadd.f32 %v318, %v190
  %v320 = vadd.f32 %v319, %v193
  %v321 = vadd.f32 %v320, %v198
  %v322 = vadd.f32 %v321, %v201
  %v323 = vadd.f32 %v322, %v206
  %v324 = vadd.f32 %v323, %v209
  %v325 = vadd.f32 %v324, %v214
  %v326 = vadd.f32 %v325, %v217
  %v327 = vadd.f32 %v326, %v222
  %v328 = vadd.f32 %v327, %v225
  %v329 = vadd.f32 %v328, %v230
  %v330 = vadd.f32 %v329, %v233
  %v331 = vrot.slane %v330, 4
  %v332 = vadd.f32 %v330, %v331
  %v333 = vrot.slane %v332, 2
  %v334 = vadd.f32 %v332, %v333
  %v335 = vrot.slane %v334, 1
  %v336 = vadd.f32 %v334, %v335
  %v337 = vmul.f32 %v174, %v174
  %v338 = vmul.f32 %v177, %v177
  %v339 = vmul.f32 %v182, %v182
  %v340 = vmul.f32 %v185, %v185
  %v341 = vmul.f32 %v190, %v190
  %v342 = vmul.f32 %v193, %v193
  %v343 = vmul.f32 %v198, %v198
  %v344 = vmul.f32 %v201, %v201
  %v345 = vmul.f32 %v206, %v206
  %v346 = vmul.f32 %v209, %v209
  %v347 = vmul.f32 %v214, %v214
  %v348 = vmul.f32 %v217, %v217
  %v349 = vmul.f32 %v222, %v222
  %v350 = vmul.f32 %v225, %v225
  %v351 = vmul.f32 %v230, %v230
  %v352 = vmul.f32 %v233, %v233
  %v353 = vadd.f32 %v337, %v338
  %v354 = vadd.f32 %v353, %v339
  %v355 = vadd.f32 %v354, %v340
  %v356 = vadd.f32 %v355, %v341
  %v357 = vadd.f32 %v356, %v342
  %v358 = vadd.f32 %v357, %v343
  %v359 = vadd.f32 %v358, %v344
  %v360 = vadd.f32 %v359, %v345
  %v361 = vadd.f32 %v360, %v346
  %v362 = vadd.f32 %v361, %v347
  %v363 = vadd.f32 %v362, %v348
  %v364 = vadd.f32 %v363, %v349
  %v365 = vadd.f32 %v364, %v350
  %v366 = vadd.f32 %v365, %v351
  %v367 = vadd.f32 %v366, %v352
  %v368 = vrot.slane %v367, 4
  %v369 = vadd.f32 %v367, %v368
  %v370 = vrot.slane %v369, 2
  %v371 = vadd.f32 %v369, %v370
  %v372 = vrot.slane %v371, 1
  %v373 = vadd.f32 %v371, %v372
  %vm374 = vcmask 1040384
  %v375 = vsel %vm374, %v336, %v373
  %vm376 = vcmask 1041408
  %v377 = vsel %vm376, %v375, 0.0
  %p378 = scmp.eq.s32.totalorder 0, 0
  // Predicated region
  $region10: #{res_block_forward.8} parent=0 // pred_check
    %p379 = pneg %p378
  $region11: #{res_block_forward.8} parent=0 // pred_check_branch
    %381 = sbr.rel (%p379) target = $region13
  $region12: #{res_block_forward.8} parent=0 // pred_region
    %382 = vst [vmem:[%s3] sm:$0xff] 0.0
  $region13: #{res_block_forward.8} parent=0 // pred_fallthru
    _
  %v383 = vld [vmem:[%s3] sm:$0xff]
  %v384 = vadd.f32 %v383, %v377
  %385 = vst [vmem:[%s3] sm:$0xff] %v384
  %s386 = sadd.s32 0, 0
  %s387 = smul.u32 16, %s386
  %p388 = scmp.lt.s32.totalorder %s387, 15
  %s389 = scalar_select %p388, %s387, 15
  %s390 = smul.addr %s389, 4
  %s391 = scalar_lea.vmem %s2, %s390
  // Predicated region
  $region14: #{res_block_forward.8} parent=0 // pred_check
    _
  $region15: #{res_block_forward.8} parent=0 // pred_check_branch
    %393 = sbr.rel (0) target = $region17
  $region16: #{res_block_forward.8} parent=0 // pred_region
    %s394 = sadd.s32 0, 0
    %s395 = smul.u32 16, %s394
  $region17: #{res_block_forward.8} parent=0 // pred_fallthru
    _
  // Predicated region
  $region18: #{res_block_forward.8} parent=0 // pred_check
    _
  $region19: #{res_block_forward.8} parent=0 // pred_check_branch
    %397 = sbr.rel (0) target = $region21
  $region20: #{res_block_forward.8} parent=0 // pred_region
    _
  $region21: #{res_block_forward.8} parent=0 // pred_fallthru
    _
  // Predicated region
  $region22: #{res_block_forward.8} parent=0 // pred_check
    _
  $region23: #{res_block_forward.8} parent=0 // pred_check_branch
    %399 = sbr.rel (0) target = $region25
  $region24: #{res_block_forward.8} parent=0 // pred_region
    %s400 = sadd.s32 0, 0
    %s401 = smul.u32 16, %s400
    %p402 = scmp.lt.s32.totalorder %s401, 15
    %s403 = scalar_select %p402, %s401, 15
    %s404 = smul.addr %s403, 4
    %s405 = scalar_lea.vmem %s2, %s404
  $region25: #{res_block_forward.8} parent=0 // pred_fallthru
    _
  // Predicated region
  $region26: #{res_block_forward.8} parent=0 // pred_check
    _
  $region27: #{res_block_forward.8} parent=0 // pred_check_branch
    %407 = sbr.rel (0) target = $region29
  $region28: #{res_block_forward.8} parent=0 // pred_region
    _
  $region29: #{res_block_forward.8} parent=0 // pred_fallthru
    _

</llo_original>
